<compile_context>
chip_gen: v6e
topology: v6e:2x2x1
jax: 0.10.0
libtpu: 0.0.40
codegen_flags: <defaults>
</compile_context>

<pallas_src>
import numpy as np
import jax
import jax.numpy as jnp
from jax.experimental import pallas as pl
from jax.experimental.pallas import tpu as pltpu

BN_EPS = 1e-5     # PyTorch BatchNorm1d default
LANE = 128        # TPU lane width: channel axes are zero-padded to multiples of this


def _round_up(n, m):
    return ((n + m - 1) // m) * m


# ---------------------------------------------------------------------------
# Fused whole-Generator kernel (single pallas_call, everything VMEM-resident)
# ---------------------------------------------------------------------------
def _build_fused_kernel(layer_specs):
    """layer_specs: static per-layer dicts {K, C_out_p, has_bias, bn, relu}."""
    n_layers = len(layer_specs)

    def kernel(*refs):
        o_ref = refs[-1]
        a = refs[0][...]                          # (R0, C0_p) bf16, channel-last
        idx = 1
        for li, spec in enumerate(layer_specs):
            t_ref = refs[idx]                     # (R_out, K*R_in) bf16 0/1 selection
            w_ref = refs[idx + 1]                 # (C_in_p, K*C_out_p) bf16 per-tap weights
            idx += 2
            if spec["has_bias"]:
                b_ref = refs[idx]; idx += 1       # (1, C_out_p) f32
            if spec["bn"]:
                g_ref = refs[idx]                 # (1, C_out_p) f32
                bt_ref = refs[idx + 1]            # (1, C_out_p) f32
                idx += 2

            K, Cop = spec["K"], spec["C_out_p"]

            # --- weight-first ConvTranspose1d: exactly 2 bf16 MXU matmuls ---
            # (1) per-tap conv partials; contraction over real channels only
            #     (no stride-dilation zeros in the operands).
            z = jnp.dot(a, w_ref[...], preferred_element_type=jnp.float32)   # (R_in, K*Cop)
            # (k, r)-ordered tap stacking: lane-group-aligned slices, sublane concat
            # (cheap VMEM copies; overlaps with MXU).
            zs = jnp.concatenate([z[:, k * Cop:(k + 1) * Cop] for k in range(K)],
                                 axis=0)                                     # (K*R_in, Cop) f32
            # (2) selection matmul folds the tap gather (stride dilation, padding,
            #     kernel flip), the tap sum and the batch block-diagonal into one
            #     bf16 matmul with f32 accumulation.
            y = jnp.dot(t_ref[...], zs.astype(jnp.bfloat16),
                        preferred_element_type=jnp.float32)                  # (R_out, Cop) f32

            if spec["has_bias"]:
                y = y + b_ref[...]

            if spec["bn"]:
                # Training-mode BatchNorm1d, biased stats over rows = (batch, length).
                # Two-pass form (mean, then centered variance) in f32.
                inv_n = 1.0 / y.shape[0]
                mean = jnp.sum(y, axis=0, keepdims=True) * inv_n
                d = y - mean
                var = jnp.sum(d * d, axis=0, keepdims=True) * inv_n
                y = d * (jax.lax.rsqrt(var + BN_EPS) * g_ref[...]) + bt_ref[...]

            if spec["relu"]:
                y = jnp.maximum(y, 0.0)

            if li == n_layers - 1:
                o_ref[...] = y                    # f32 lane-dense (R_out, C_out_p) store
            else:
                a = y.astype(jnp.bfloat16)        # carry inter-layer activation in bf16

    return kernel


# ---------------------------------------------------------------------------
# One-time precompute of kernel operands (hoisted out of the forward hot path)
# ---------------------------------------------------------------------------
def precompute_operands(params, batch, l_in):
    """Build per-layer selection matrices (bf16), per-tap stacked/flipped/padded
    weights (bf16) and (1, C_pad) affine params for a fixed (batch, input length)."""
    ops = []
    L = l_in
    first = True
    for lyr in params:
        w = np.asarray(lyr["w"], np.float32)               # (C_in, C_out, K) PyTorch layout
        C_in, C_out, K = w.shape
        s, p = lyr["stride"], lyr["padding"]
        halo = K - 1 - p
        L_out = (L - 1) * s + K - 2 * p
        C_in_p = _round_up(C_in, LANE)
        C_out_p = _round_up(C_out, LANE)
        R_in, R_out = batch * L, batch * L_out
        R_in_rows = _round_up(R_in, 8) if first else R_in  # only the external input is row-padded

        # Per-batch selection: T1[kk, t, l] = 1 iff output position t reads input l at
        # tap kk of the (dilated, padded, flipped) transposed convolution.
        T1 = np.zeros((K, L_out, L), np.float32)
        for kk in range(K):
            for t in range(L_out):
                m = t + kk - halo
                if m >= 0 and m % s == 0 and m // s < L:
                    T1[kk, t, m // s] = 1.0

        # T_wide[(b*L_out+t), kk*R_in_rows + (b*L+l)] = T1[kk, t, l]; 0/1 so exact in bf16.
        # TODO(synk): O(B^2) kron is fine at B=2; at production batch, switch to a
        # "parallel" batch grid axis with per-batch T1 and a two-phase BN reduction.
        T_wide = np.zeros((R_out, K * R_in_rows), np.float32)
        for kk in range(K):
            T_wide[:, kk * R_in_rows: kk * R_in_rows + R_in] = \
                np.kron(np.eye(batch, dtype=np.float32), T1[kk])

        # Per-tap weight blocks along lanes (kernel flip folded in); padded channel
        # rows/cols stay zero so padded lanes remain exactly zero through the net.
        W_wide = np.zeros((C_in_p, K * C_out_p), np.float32)
        for kk in range(K):
            W_wide[:C_in, kk * C_out_p: kk * C_out_p + C_out] = w[:, :, K - 1 - kk]

        bias = np.zeros((1, C_out_p), np.float32)
        if lyr["bias"] is not None:
            bias[0, :C_out] = np.asarray(lyr["bias"], np.float32)
        gamma = np.zeros((1, C_out_p), np.float32)          # zero gamma keeps padded lanes at 0
        beta = np.zeros((1, C_out_p), np.float32)
        if lyr["gamma"] is not None:
            gamma[0, :C_out] = np.asarray(lyr["gamma"], np.float32)
            beta[0, :C_out] = np.asarray(lyr["beta"], np.float32)

        ops.append(dict(
            T=jnp.asarray(T_wide).astype(jnp.bfloat16),
            W=jnp.asarray(W_wide).astype(jnp.bfloat16),
            bias=jnp.asarray(bias), gamma=jnp.asarray(gamma), beta=jnp.asarray(beta),
            K=K, has_bias=lyr["bias"] is not None, bn=lyr["bn"], relu=lyr["relu"],
            C_in=C_in, C_in_p=C_in_p, C_out=C_out, C_out_p=C_out_p,
            R_in=R_in, R_in_rows=R_in_rows, L_out=L_out))
        first = False
        L = L_out
    return ops


# ---------------------------------------------------------------------------
# Forward pass (single pallas_call; NCL <-> channel-last transposes at the boundary)
# ---------------------------------------------------------------------------
def generator_forward(ops, x, mask=None):
    """x: (B, C, L) NCL, like the PyTorch module. Returns (B, n_features, L_out)."""
    B, C_in, L_in = x.shape
    assert C_in == ops[0]["C_in"] and B * L_in == ops[0]["R_in"]

    # NCL -> channel-last 2-D (rows are batch-major (b, l) pairs); zero-pad rows /
    # channel lanes to the kernel's aligned sizes; cast once to bf16 (MXU operand).
    a = jnp.transpose(x, (0, 2, 1)).reshape(B * L_in, C_in).astype(jnp.float32)
    a = jnp.pad(a, ((0, ops[0]["R_in_rows"] - B * L_in), (0, ops[0]["C_in_p"] - C_in)))
    a = a.astype(jnp.bfloat16)

    flat, specs = [], []
    for op in ops:
        flat += [op["T"], op["W"]]
        if op["has_bias"]:
            flat.append(op["bias"])
        if op["bn"]:
            flat += [op["gamma"], op["beta"]]
        specs.append({k: op[k] for k in ("K", "C_out_p", "has_bias", "bn", "relu")})

    last = ops[-1]
    R_out = B * last["L_out"]

    # NOTE: gridless on purpose at these sizes — a grid (and v7x's second TC) only
    # pays off once B*L_out is large enough to amortize per-step overhead.
    y2d = pl.pallas_call(
        _build_fused_kernel(specs),
        out_shape=jax.ShapeDtypeStruct((R_out, last["C_out_p"]), jnp.float32),
        in_specs=[pl.BlockSpec(memory_space=pltpu.MemorySpace.VMEM)] * (1 + len(flat)),
        out_specs=pl.BlockSpec(memory_space=pltpu.MemorySpace.VMEM),
    )(a, *flat)

    # channel-last -> NCL, drop padded channels (one boundary transpose).
    y = y2d[:, :last["C_out"]].reshape(B, last["L_out"], last["C_out"]).transpose(0, 2, 1)
    if mask is not None:
        y = y * mask   # elementwise glue, same as PyTorch `input * mask`
    return y


# ---------------------------------------------------------------------------
# Generator parameter construction (deterministic, mirrors nn.Module __init__ shapes)
# ---------------------------------------------------------------------------
def init_generator_params(key, window_size=32, hidden_multiplier=32, latent_size=100,
                          n_features=3, max_filters=256, kernel_multiplier=1):
    n_layers = int(np.log2(window_size))
    layers, filters_list = [], []

    # layer 0: ConvTranspose1d(latent, f, k=4, s=1, p=0, bias=False) + BN (no ReLU)
    filters = min(max_filters, hidden_multiplier * 2 ** (n_layers - 2))
    key, kw, kg, kb = jax.random.split(key, 4)
    layers.append(dict(
        w=0.1 * jax.random.normal(kw, (latent_size, filters, 4), jnp.float32),
        bias=None,
        gamma=1.0 + 0.05 * jax.random.normal(kg, (filters,), jnp.float32),
        beta=0.05 * jax.random.normal(kb, (filters,), jnp.float32),
        stride=1, padding=0, bn=True, relu=False))
    filters_list.append(filters)

    # middle blocks: ConvT(k=4*km, s=2, p=1+2*(km-1), bias=False) + BN + ReLU
    for i in reversed(range(1, n_layers - 1)):
        filters = min(max_filters, hidden_multiplier * 2 ** (i - 1))
        ksz = 4 * kernel_multiplier
        pad = 1 + (kernel_multiplier - 1) * 2
        key, kw, kg, kb = jax.random.split(key, 4)
        layers.append(dict(
            w=0.1 * jax.random.normal(kw, (filters_list[-1], filters, ksz), jnp.float32),
            bias=None,
            gamma=1.0 + 0.05 * jax.random.normal(kg, (filters,), jnp.float32),
            beta=0.05 * jax.random.normal(kb, (filters,), jnp.float32),
            stride=2, padding=pad, bn=True, relu=True))
        filters_list.append(filters)

    # final: ConvTranspose1d(f, n_features, k=3, s=1, p=1, bias=True)
    key, kw, kb = jax.random.split(key, 3)
    layers.append(dict(
        w=0.1 * jax.random.normal(kw, (filters_list[-1], n_features, 3), jnp.float32),
        bias=0.1 * jax.random.normal(kb, (n_features,), jnp.float32),
        gamma=None, beta=None,
        stride=1, padding=1, bn=False, relu=False))
    return layers


# ---------------------------------------------------------------------------
# Pure-JAX reference (independent formulation: lax.conv_general_dilated)
# ---------------------------------------------------------------------------
def _ref_forward(params, x, mm_dtype=jnp.float32):
    h = x.astype(jnp.float32)
    for lyr in params:
        w_pt, bias = lyr["w"], lyr["bias"]
        K = w_pt.shape[2]
        halo = K - 1 - lyr["padding"]
        rhs = jnp.transpose(w_pt[:, :, ::-1], (1, 0, 2))       # (C_out, C_in, K)
        y = jax.lax.conv_general_dilated(
            h.astype(mm_dtype), rhs.astype(mm_dtype),
            window_strides=(1,), padding=[(halo, halo)],
            lhs_dilation=(lyr["stride"],),
            dimension_numbers=("NCH", "OIH", "NCH"),
            preferred_element_type=jnp.float32)
        if bias is not None:
            y = y + bias[None, :, None]
        if lyr["bn"]:
            mean = jnp.mean(y, axis=(0, 2), keepdims=True)
            var = jnp.mean((y - mean) ** 2, axis=(0, 2), keepdims=True)
            y = (y - mean) / jnp.sqrt(var + BN_EPS) * lyr["gamma"][None, :, None] \
                + lyr["beta"][None, :, None]
        if lyr["relu"]:
            y = jnp.maximum(y, 0.0)
        h = y
    return h


if __name__ == "__main__":
    key = jax.random.PRNGKey(0)
    kp, kx = jax.random.split(key)

    # Module defaults: window 32, hidden_multiplier 32, latent 100, 3 features,
    # max_filters 256, kernel_multiplier 1  ->  5 ConvT blocks,
    # channels 100 -> 256 -> 128 -> 64 -> 32 -> 3, lengths 1 -> 4 -> 8 -> 16 -> 32 -> 32.
    window_size, hidden_multiplier, latent_size = 32, 32, 100
    n_features, max_filters, kernel_multiplier = 3, 256, 1
    B = 2

    params = init_generator_params(kp, window_size, hidden_multiplier, latent_size,
                                   n_features, max_filters, kernel_multiplier)
    x = jax.random.normal(kx, (B, latent_size, 1), jnp.float32)

    ops = precompute_operands(params, batch=B, l_in=x.shape[2])   # one-time setup
    fwd = jax.jit(lambda xx: generator_forward(ops, xx))

    out = jax.block_until_ready(fwd(x))
    assert out.shape == (B, n_features, window_size)

    # Check vs a reference using bf16 operands / f32 accumulation (the kernel also
    # quantizes per-tap conv partials to bf16, hence the slightly wider tolerance).
    ref_bf16 = _ref_forward(params, x, jnp.bfloat16)
    np.testing.assert_allclose(np.asarray(out), np.asarray(ref_bf16), rtol=3e-2, atol=3e-2)

    # Loose sanity check vs the full-f32 reference (bounds the bf16 MXU approximation).
    ref_f32 = _ref_forward(params, x, jnp.float32)
    np.testing.assert_allclose(np.asarray(out), np.asarray(ref_f32), rtol=1.5e-1, atol=1.5e-1)

    print("KERNEL_OK")
</pallas_src>

<mosaic_0001>
module attributes {stable_mosaic.version = 11 : i64} {
  func.func @kernel(%arg0: memref<8x128xbf16, #tpu.memory_space<vmem>>, %arg1: memref<8x32xbf16, #tpu.memory_space<vmem>>, %arg2: memref<128x1024xbf16, #tpu.memory_space<vmem>>, %arg3: memref<1x256xf32, #tpu.memory_space<vmem>>, %arg4: memref<1x256xf32, #tpu.memory_space<vmem>>, %arg5: memref<16x32xbf16, #tpu.memory_space<vmem>>, %arg6: memref<256x512xbf16, #tpu.memory_space<vmem>>, %arg7: memref<1x128xf32, #tpu.memory_space<vmem>>, %arg8: memref<1x128xf32, #tpu.memory_space<vmem>>, %arg9: memref<32x64xbf16, #tpu.memory_space<vmem>>, %arg10: memref<128x512xbf16, #tpu.memory_space<vmem>>, %arg11: memref<1x128xf32, #tpu.memory_space<vmem>>, %arg12: memref<1x128xf32, #tpu.memory_space<vmem>>, %arg13: memref<64x128xbf16, #tpu.memory_space<vmem>>, %arg14: memref<128x512xbf16, #tpu.memory_space<vmem>>, %arg15: memref<1x128xf32, #tpu.memory_space<vmem>>, %arg16: memref<1x128xf32, #tpu.memory_space<vmem>>, %arg17: memref<64x192xbf16, #tpu.memory_space<vmem>>, %arg18: memref<128x384xbf16, #tpu.memory_space<vmem>>, %arg19: memref<1x128xf32, #tpu.memory_space<vmem>>, %arg20: memref<64x128xf32, #tpu.memory_space<vmem>>) attributes {dimension_semantics = [], scalar_prefetch = 0 : i64, scratch_operands = 0 : i64, tpu.core_type = #tpu.core_type<tc>} {
    %c0 = arith.constant 0 : index
    %c0_0 = arith.constant 0 : index
    %0 = vector.load %arg0[%c0, %c0_0] : memref<8x128xbf16, #tpu.memory_space<vmem>>, vector<8x128xbf16>
    %c0_1 = arith.constant 0 : index
    %c0_2 = arith.constant 0 : index
    %1 = vector.load %arg2[%c0_1, %c0_2] : memref<128x1024xbf16, #tpu.memory_space<vmem>>, vector<128x1024xbf16>
    %cst = arith.constant dense<0.000000e+00> : vector<8x1024xf32>
    %2 = tpu.matmul %0, %1, %cst {dimension_numbers = #tpu.dot_dimension_numbers<[1], [0], [0], [1], [0, 0, 1, 1], [], []>} : vector<8x128xbf16>, vector<128x1024xbf16>, vector<8x1024xf32> -> vector<8x1024xf32>
    %3 = vector.extract_strided_slice %2 {offsets = [0, 0], sizes = [8, 256], strides = [1, 1]} : vector<8x1024xf32> to vector<8x256xf32>
    %4 = vector.extract_strided_slice %2 {offsets = [0, 256], sizes = [8, 256], strides = [1, 1]} : vector<8x1024xf32> to vector<8x256xf32>
    %5 = vector.extract_strided_slice %2 {offsets = [0, 512], sizes = [8, 256], strides = [1, 1]} : vector<8x1024xf32> to vector<8x256xf32>
    %6 = vector.extract_strided_slice %2 {offsets = [0, 768], sizes = [8, 256], strides = [1, 1]} : vector<8x1024xf32> to vector<8x256xf32>
    %7 = tpu.concatenate %3, %4, %5, %6 in 0 : vector<8x256xf32>, vector<8x256xf32>, vector<8x256xf32>, vector<8x256xf32> -> vector<32x256xf32>
    %c0_3 = arith.constant 0 : index
    %c0_4 = arith.constant 0 : index
    %8 = vector.load %arg1[%c0_3, %c0_4] : memref<8x32xbf16, #tpu.memory_space<vmem>>, vector<8x32xbf16>
    %9 = arith.truncf %7 : vector<32x256xf32> to vector<32x256xbf16>
    %cst_5 = arith.constant dense<0.000000e+00> : vector<8x256xf32>
    %10 = tpu.matmul %8, %9, %cst_5 {dimension_numbers = #tpu.dot_dimension_numbers<[1], [0], [0], [1], [0, 0, 1, 1], [], []>} : vector<8x32xbf16>, vector<32x256xbf16>, vector<8x256xf32> -> vector<8x256xf32>
    %cst_6 = arith.constant dense<0.000000e+00> : vector<256xf32>
    %11 = vector.multi_reduction <add>, %10, %cst_6 [0] : vector<8x256xf32> to vector<256xf32>
    %12 = vector.shape_cast %11 : vector<256xf32> to vector<1x256xf32>
    %cst_7 = arith.constant 1.250000e-01 : f32
    %13 = vector.broadcast %cst_7 : f32 to vector<1x256xf32>
    %14 = arith.mulf %12, %13 : vector<1x256xf32>
    %15 = vector.broadcast %14 : vector<1x256xf32> to vector<8x256xf32>
    %16 = arith.subf %10, %15 : vector<8x256xf32>
    %17 = arith.mulf %16, %16 : vector<8x256xf32>
    %cst_8 = arith.constant dense<0.000000e+00> : vector<256xf32>
    %18 = vector.multi_reduction <add>, %17, %cst_8 [0] : vector<8x256xf32> to vector<256xf32>
    %19 = vector.shape_cast %18 : vector<256xf32> to vector<1x256xf32>
    %cst_9 = arith.constant 1.250000e-01 : f32
    %20 = vector.broadcast %cst_9 : f32 to vector<1x256xf32>
    %21 = arith.mulf %19, %20 : vector<1x256xf32>
    %cst_10 = arith.constant 9.99999974E-6 : f32
    %22 = vector.broadcast %cst_10 : f32 to vector<1x256xf32>
    %23 = arith.addf %21, %22 : vector<1x256xf32>
    %24 = math.rsqrt %23 : vector<1x256xf32>
    %c0_11 = arith.constant 0 : index
    %c0_12 = arith.constant 0 : index
    %25 = vector.load %arg3[%c0_11, %c0_12] : memref<1x256xf32, #tpu.memory_space<vmem>>, vector<1x256xf32>
    %26 = arith.mulf %24, %25 : vector<1x256xf32>
    %27 = vector.broadcast %26 : vector<1x256xf32> to vector<8x256xf32>
    %28 = arith.mulf %16, %27 : vector<8x256xf32>
    %c0_13 = arith.constant 0 : index
    %c0_14 = arith.constant 0 : index
    %29 = vector.load %arg4[%c0_13, %c0_14] : memref<1x256xf32, #tpu.memory_space<vmem>>, vector<1x256xf32>
    %30 = vector.broadcast %29 : vector<1x256xf32> to vector<8x256xf32>
    %31 = arith.addf %28, %30 : vector<8x256xf32>
    %32 = arith.truncf %31 : vector<8x256xf32> to vector<8x256xbf16>
    %c0_15 = arith.constant 0 : index
    %c0_16 = arith.constant 0 : index
    %33 = vector.load %arg6[%c0_15, %c0_16] : memref<256x512xbf16, #tpu.memory_space<vmem>>, vector<256x512xbf16>
    %cst_17 = arith.constant dense<0.000000e+00> : vector<8x512xf32>
    %34 = tpu.matmul %32, %33, %cst_17 {dimension_numbers = #tpu.dot_dimension_numbers<[1], [0], [0], [1], [0, 0, 1, 1], [], []>} : vector<8x256xbf16>, vector<256x512xbf16>, vector<8x512xf32> -> vector<8x512xf32>
    %35 = vector.extract_strided_slice %34 {offsets = [0, 0], sizes = [8, 128], strides = [1, 1]} : vector<8x512xf32> to vector<8x128xf32>
    %36 = vector.extract_strided_slice %34 {offsets = [0, 128], sizes = [8, 128], strides = [1, 1]} : vector<8x512xf32> to vector<8x128xf32>
    %37 = vector.extract_strided_slice %34 {offsets = [0, 256], sizes = [8, 128], strides = [1, 1]} : vector<8x512xf32> to vector<8x128xf32>
    %38 = vector.extract_strided_slice %34 {offsets = [0, 384], sizes = [8, 128], strides = [1, 1]} : vector<8x512xf32> to vector<8x128xf32>
    %39 = tpu.concatenate %35, %36, %37, %38 in 0 : vector<8x128xf32>, vector<8x128xf32>, vector<8x128xf32>, vector<8x128xf32> -> vector<32x128xf32>
    %c0_18 = arith.constant 0 : index
    %c0_19 = arith.constant 0 : index
    %40 = vector.load %arg5[%c0_18, %c0_19] : memref<16x32xbf16, #tpu.memory_space<vmem>>, vector<16x32xbf16>
    %41 = arith.truncf %39 : vector<32x128xf32> to vector<32x128xbf16>
    %cst_20 = arith.constant dense<0.000000e+00> : vector<16x128xf32>
    %42 = tpu.matmul %40, %41, %cst_20 {dimension_numbers = #tpu.dot_dimension_numbers<[1], [0], [0], [1], [0, 0, 1, 1], [], []>} : vector<16x32xbf16>, vector<32x128xbf16>, vector<16x128xf32> -> vector<16x128xf32>
    %cst_21 = arith.constant dense<0.000000e+00> : vector<128xf32>
    %43 = vector.multi_reduction <add>, %42, %cst_21 [0] : vector<16x128xf32> to vector<128xf32>
    %44 = vector.shape_cast %43 : vector<128xf32> to vector<1x128xf32>
    %cst_22 = arith.constant 6.250000e-02 : f32
    %45 = vector.broadcast %cst_22 : f32 to vector<1x128xf32>
    %46 = arith.mulf %44, %45 : vector<1x128xf32>
    %47 = vector.broadcast %46 : vector<1x128xf32> to vector<16x128xf32>
    %48 = arith.subf %42, %47 : vector<16x128xf32>
    %49 = arith.mulf %48, %48 : vector<16x128xf32>
    %cst_23 = arith.constant dense<0.000000e+00> : vector<128xf32>
    %50 = vector.multi_reduction <add>, %49, %cst_23 [0] : vector<16x128xf32> to vector<128xf32>
    %51 = vector.shape_cast %50 : vector<128xf32> to vector<1x128xf32>
    %cst_24 = arith.constant 6.250000e-02 : f32
    %52 = vector.broadcast %cst_24 : f32 to vector<1x128xf32>
    %53 = arith.mulf %51, %52 : vector<1x128xf32>
    %cst_25 = arith.constant 9.99999974E-6 : f32
    %54 = vector.broadcast %cst_25 : f32 to vector<1x128xf32>
    %55 = arith.addf %53, %54 : vector<1x128xf32>
    %56 = math.rsqrt %55 : vector<1x128xf32>
    %c0_26 = arith.constant 0 : index
    %c0_27 = arith.constant 0 : index
    %57 = vector.load %arg7[%c0_26, %c0_27] : memref<1x128xf32, #tpu.memory_space<vmem>>, vector<1x128xf32>
    %58 = arith.mulf %56, %57 : vector<1x128xf32>
    %59 = vector.broadcast %58 : vector<1x128xf32> to vector<16x128xf32>
    %60 = arith.mulf %48, %59 : vector<16x128xf32>
    %c0_28 = arith.constant 0 : index
    %c0_29 = arith.constant 0 : index
    %61 = vector.load %arg8[%c0_28, %c0_29] : memref<1x128xf32, #tpu.memory_space<vmem>>, vector<1x128xf32>
    %62 = vector.broadcast %61 : vector<1x128xf32> to vector<16x128xf32>
    %63 = arith.addf %60, %62 : vector<16x128xf32>
    %cst_30 = arith.constant 0.000000e+00 : f32
    %64 = vector.broadcast %cst_30 : f32 to vector<16x128xf32>
    %65 = arith.maximumf %63, %64 : vector<16x128xf32>
    %66 = arith.truncf %65 : vector<16x128xf32> to vector<16x128xbf16>
    %c0_31 = arith.constant 0 : index
    %c0_32 = arith.constant 0 : index
    %67 = vector.load %arg10[%c0_31, %c0_32] : memref<128x512xbf16, #tpu.memory_space<vmem>>, vector<128x512xbf16>
    %cst_33 = arith.constant dense<0.000000e+00> : vector<16x512xf32>
    %68 = tpu.matmul %66, %67, %cst_33 {dimension_numbers = #tpu.dot_dimension_numbers<[1], [0], [0], [1], [0, 0, 1, 1], [], []>} : vector<16x128xbf16>, vector<128x512xbf16>, vector<16x512xf32> -> vector<16x512xf32>
    %69 = vector.extract_strided_slice %68 {offsets = [0, 0], sizes = [16, 128], strides = [1, 1]} : vector<16x512xf32> to vector<16x128xf32>
    %70 = vector.extract_strided_slice %68 {offsets = [0, 128], sizes = [16, 128], strides = [1, 1]} : vector<16x512xf32> to vector<16x128xf32>
    %71 = vector.extract_strided_slice %68 {offsets = [0, 256], sizes = [16, 128], strides = [1, 1]} : vector<16x512xf32> to vector<16x128xf32>
    %72 = vector.extract_strided_slice %68 {offsets = [0, 384], sizes = [16, 128], strides = [1, 1]} : vector<16x512xf32> to vector<16x128xf32>
    %73 = tpu.concatenate %69, %70, %71, %72 in 0 : vector<16x128xf32>, vector<16x128xf32>, vector<16x128xf32>, vector<16x128xf32> -> vector<64x128xf32>
    %c0_34 = arith.constant 0 : index
    %c0_35 = arith.constant 0 : index
    %74 = vector.load %arg9[%c0_34, %c0_35] : memref<32x64xbf16, #tpu.memory_space<vmem>>, vector<32x64xbf16>
    %75 = arith.truncf %73 : vector<64x128xf32> to vector<64x128xbf16>
    %cst_36 = arith.constant dense<0.000000e+00> : vector<32x128xf32>
    %76 = tpu.matmul %74, %75, %cst_36 {dimension_numbers = #tpu.dot_dimension_numbers<[1], [0], [0], [1], [0, 0, 1, 1], [], []>} : vector<32x64xbf16>, vector<64x128xbf16>, vector<32x128xf32> -> vector<32x128xf32>
    %cst_37 = arith.constant dense<0.000000e+00> : vector<128xf32>
    %77 = vector.multi_reduction <add>, %76, %cst_37 [0] : vector<32x128xf32> to vector<128xf32>
    %78 = vector.shape_cast %77 : vector<128xf32> to vector<1x128xf32>
    %cst_38 = arith.constant 3.125000e-02 : f32
    %79 = vector.broadcast %cst_38 : f32 to vector<1x128xf32>
    %80 = arith.mulf %78, %79 : vector<1x128xf32>
    %81 = vector.broadcast %80 : vector<1x128xf32> to vector<32x128xf32>
    %82 = arith.subf %76, %81 : vector<32x128xf32>
    %83 = arith.mulf %82, %82 : vector<32x128xf32>
    %cst_39 = arith.constant dense<0.000000e+00> : vector<128xf32>
    %84 = vector.multi_reduction <add>, %83, %cst_39 [0] : vector<32x128xf32> to vector<128xf32>
    %85 = vector.shape_cast %84 : vector<128xf32> to vector<1x128xf32>
    %cst_40 = arith.constant 3.125000e-02 : f32
    %86 = vector.broadcast %cst_40 : f32 to vector<1x128xf32>
    %87 = arith.mulf %85, %86 : vector<1x128xf32>
    %cst_41 = arith.constant 9.99999974E-6 : f32
    %88 = vector.broadcast %cst_41 : f32 to vector<1x128xf32>
    %89 = arith.addf %87, %88 : vector<1x128xf32>
    %90 = math.rsqrt %89 : vector<1x128xf32>
    %c0_42 = arith.constant 0 : index
    %c0_43 = arith.constant 0 : index
    %91 = vector.load %arg11[%c0_42, %c0_43] : memref<1x128xf32, #tpu.memory_space<vmem>>, vector<1x128xf32>
    %92 = arith.mulf %90, %91 : vector<1x128xf32>
    %93 = vector.broadcast %92 : vector<1x128xf32> to vector<32x128xf32>
    %94 = arith.mulf %82, %93 : vector<32x128xf32>
    %c0_44 = arith.constant 0 : index
    %c0_45 = arith.constant 0 : index
    %95 = vector.load %arg12[%c0_44, %c0_45] : memref<1x128xf32, #tpu.memory_space<vmem>>, vector<1x128xf32>
    %96 = vector.broadcast %95 : vector<1x128xf32> to vector<32x128xf32>
    %97 = arith.addf %94, %96 : vector<32x128xf32>
    %cst_46 = arith.constant 0.000000e+00 : f32
    %98 = vector.broadcast %cst_46 : f32 to vector<32x128xf32>
    %99 = arith.maximumf %97, %98 : vector<32x128xf32>
    %100 = arith.truncf %99 : vector<32x128xf32> to vector<32x128xbf16>
    %c0_47 = arith.constant 0 : index
    %c0_48 = arith.constant 0 : index
    %101 = vector.load %arg14[%c0_47, %c0_48] : memref<128x512xbf16, #tpu.memory_space<vmem>>, vector<128x512xbf16>
    %cst_49 = arith.constant dense<0.000000e+00> : vector<32x512xf32>
    %102 = tpu.matmul %100, %101, %cst_49 {dimension_numbers = #tpu.dot_dimension_numbers<[1], [0], [0], [1], [0, 0, 1, 1], [], []>} : vector<32x128xbf16>, vector<128x512xbf16>, vector<32x512xf32> -> vector<32x512xf32>
    %103 = vector.extract_strided_slice %102 {offsets = [0, 0], sizes = [32, 128], strides = [1, 1]} : vector<32x512xf32> to vector<32x128xf32>
    %104 = vector.extract_strided_slice %102 {offsets = [0, 128], sizes = [32, 128], strides = [1, 1]} : vector<32x512xf32> to vector<32x128xf32>
    %105 = vector.extract_strided_slice %102 {offsets = [0, 256], sizes = [32, 128], strides = [1, 1]} : vector<32x512xf32> to vector<32x128xf32>
    %106 = vector.extract_strided_slice %102 {offsets = [0, 384], sizes = [32, 128], strides = [1, 1]} : vector<32x512xf32> to vector<32x128xf32>
    %107 = tpu.concatenate %103, %104, %105, %106 in 0 : vector<32x128xf32>, vector<32x128xf32>, vector<32x128xf32>, vector<32x128xf32> -> vector<128x128xf32>
    %c0_50 = arith.constant 0 : index
    %c0_51 = arith.constant 0 : index
    %108 = vector.load %arg13[%c0_50, %c0_51] : memref<64x128xbf16, #tpu.memory_space<vmem>>, vector<64x128xbf16>
    %109 = arith.truncf %107 : vector<128x128xf32> to vector<128x128xbf16>
    %cst_52 = arith.constant dense<0.000000e+00> : vector<64x128xf32>
    %110 = tpu.matmul %108, %109, %cst_52 {dimension_numbers = #tpu.dot_dimension_numbers<[1], [0], [0], [1], [0, 0, 1, 1], [], []>} : vector<64x128xbf16>, vector<128x128xbf16>, vector<64x128xf32> -> vector<64x128xf32>
    %cst_53 = arith.constant dense<0.000000e+00> : vector<128xf32>
    %111 = vector.multi_reduction <add>, %110, %cst_53 [0] : vector<64x128xf32> to vector<128xf32>
    %112 = vector.shape_cast %111 : vector<128xf32> to vector<1x128xf32>
    %cst_54 = arith.constant 1.562500e-02 : f32
    %113 = vector.broadcast %cst_54 : f32 to vector<1x128xf32>
    %114 = arith.mulf %112, %113 : vector<1x128xf32>
    %115 = vector.broadcast %114 : vector<1x128xf32> to vector<64x128xf32>
    %116 = arith.subf %110, %115 : vector<64x128xf32>
    %117 = arith.mulf %116, %116 : vector<64x128xf32>
    %cst_55 = arith.constant dense<0.000000e+00> : vector<128xf32>
    %118 = vector.multi_reduction <add>, %117, %cst_55 [0] : vector<64x128xf32> to vector<128xf32>
    %119 = vector.shape_cast %118 : vector<128xf32> to vector<1x128xf32>
    %cst_56 = arith.constant 1.562500e-02 : f32
    %120 = vector.broadcast %cst_56 : f32 to vector<1x128xf32>
    %121 = arith.mulf %119, %120 : vector<1x128xf32>
    %cst_57 = arith.constant 9.99999974E-6 : f32
    %122 = vector.broadcast %cst_57 : f32 to vector<1x128xf32>
    %123 = arith.addf %121, %122 : vector<1x128xf32>
    %124 = math.rsqrt %123 : vector<1x128xf32>
    %c0_58 = arith.constant 0 : index
    %c0_59 = arith.constant 0 : index
    %125 = vector.load %arg15[%c0_58, %c0_59] : memref<1x128xf32, #tpu.memory_space<vmem>>, vector<1x128xf32>
    %126 = arith.mulf %124, %125 : vector<1x128xf32>
    %127 = vector.broadcast %126 : vector<1x128xf32> to vector<64x128xf32>
    %128 = arith.mulf %116, %127 : vector<64x128xf32>
    %c0_60 = arith.constant 0 : index
    %c0_61 = arith.constant 0 : index
    %129 = vector.load %arg16[%c0_60, %c0_61] : memref<1x128xf32, #tpu.memory_space<vmem>>, vector<1x128xf32>
    %130 = vector.broadcast %129 : vector<1x128xf32> to vector<64x128xf32>
    %131 = arith.addf %128, %130 : vector<64x128xf32>
    %cst_62 = arith.constant 0.000000e+00 : f32
    %132 = vector.broadcast %cst_62 : f32 to vector<64x128xf32>
    %133 = arith.maximumf %131, %132 : vector<64x128xf32>
    %134 = arith.truncf %133 : vector<64x128xf32> to vector<64x128xbf16>
    %c0_63 = arith.constant 0 : index
    %c0_64 = arith.constant 0 : index
    %135 = vector.load %arg18[%c0_63, %c0_64] : memref<128x384xbf16, #tpu.memory_space<vmem>>, vector<128x384xbf16>
    %cst_65 = arith.constant dense<0.000000e+00> : vector<64x384xf32>
    %136 = tpu.matmul %134, %135, %cst_65 {dimension_numbers = #tpu.dot_dimension_numbers<[1], [0], [0], [1], [0, 0, 1, 1], [], []>} : vector<64x128xbf16>, vector<128x384xbf16>, vector<64x384xf32> -> vector<64x384xf32>
    %137 = vector.extract_strided_slice %136 {offsets = [0, 0], sizes = [64, 128], strides = [1, 1]} : vector<64x384xf32> to vector<64x128xf32>
    %138 = vector.extract_strided_slice %136 {offsets = [0, 128], sizes = [64, 128], strides = [1, 1]} : vector<64x384xf32> to vector<64x128xf32>
    %139 = vector.extract_strided_slice %136 {offsets = [0, 256], sizes = [64, 128], strides = [1, 1]} : vector<64x384xf32> to vector<64x128xf32>
    %140 = tpu.concatenate %137, %138, %139 in 0 : vector<64x128xf32>, vector<64x128xf32>, vector<64x128xf32> -> vector<192x128xf32>
    %c0_66 = arith.constant 0 : index
    %c0_67 = arith.constant 0 : index
    %141 = vector.load %arg17[%c0_66, %c0_67] : memref<64x192xbf16, #tpu.memory_space<vmem>>, vector<64x192xbf16>
    %142 = arith.truncf %140 : vector<192x128xf32> to vector<192x128xbf16>
    %cst_68 = arith.constant dense<0.000000e+00> : vector<64x128xf32>
    %143 = tpu.matmul %141, %142, %cst_68 {dimension_numbers = #tpu.dot_dimension_numbers<[1], [0], [0], [1], [0, 0, 1, 1], [], []>} : vector<64x192xbf16>, vector<192x128xbf16>, vector<64x128xf32> -> vector<64x128xf32>
    %c0_69 = arith.constant 0 : index
    %c0_70 = arith.constant 0 : index
    %144 = vector.load %arg19[%c0_69, %c0_70] : memref<1x128xf32, #tpu.memory_space<vmem>>, vector<1x128xf32>
    %145 = vector.broadcast %144 : vector<1x128xf32> to vector<64x128xf32>
    %146 = arith.addf %143, %145 : vector<64x128xf32>
    %c0_71 = arith.constant 0 : index
    %c0_72 = arith.constant 0 : index
    %147 = vector.load %arg20[%c0_71, %c0_72] : memref<64x128xf32, #tpu.memory_space<vmem>>, vector<64x128xf32>
    tpu.vector_store %arg20[%c0_71, %c0_72], %146 {strides = array<i32>} : memref<64x128xf32, #tpu.memory_space<vmem>>, vector<64x128xf32>,
    return
  }
}

</mosaic_0001>

<llo_original>
// kernel: _lambda_.1
$region0: #{_lambda_.1}
  #allocation0 [shape = 'u32[]', space=smem, size = 0x4, offset = 0x4, fixed_abs, tag = 'smem constant byte address 0x4 - core index']
  #allocation1 [shape = 'u32[144,128]{1,0:T(1,128)}', space=vmem, size = 0x12000, scoped, tag = 'internal scratch']
  %s0 = inlined_call_operand.vmem [shape: bf16[8,128], index: 0, kind: input, shape index: {}]
  %s1 = inlined_call_operand.hbm [shape: bf16[8,32], index: 1, kind: input, shape index: {}]
  %s2 = inlined_call_operand.hbm [shape: bf16[128,1024], index: 2, kind: input, shape index: {}]
  %s3 = inlined_call_operand.hbm [shape: f32[1,256], index: 3, kind: input, shape index: {}]
  %s4 = inlined_call_operand.vmem [shape: f32[1,256], index: 4, kind: input, shape index: {}]
  %s5 = inlined_call_operand.hbm [shape: bf16[16,32], index: 5, kind: input, shape index: {}]
  %s6 = inlined_call_operand.hbm [shape: bf16[256,512], index: 6, kind: input, shape index: {}]
  %s7 = inlined_call_operand.hbm [shape: f32[1,128], index: 7, kind: input, shape index: {}]
  %s8 = inlined_call_operand.hbm [shape: f32[1,128], index: 8, kind: input, shape index: {}]
  %s9 = inlined_call_operand.hbm [shape: bf16[32,64], index: 9, kind: input, shape index: {}]
  %s10 = inlined_call_operand.hbm [shape: bf16[128,512], index: 10, kind: input, shape index: {}]
  %s11 = inlined_call_operand.hbm [shape: f32[1,128], index: 11, kind: input, shape index: {}]
  %s12 = inlined_call_operand.hbm [shape: f32[1,128], index: 12, kind: input, shape index: {}]
  %s13 = inlined_call_operand.vmem [shape: bf16[64,128], index: 13, kind: input, shape index: {}]
  %s14 = inlined_call_operand.hbm [shape: bf16[128,512], index: 14, kind: input, shape index: {}]
  %s15 = inlined_call_operand.vmem [shape: f32[1,128], index: 15, kind: input, shape index: {}]
  %s16 = inlined_call_operand.vmem [shape: f32[1,128], index: 16, kind: input, shape index: {}]
  %s17 = inlined_call_operand.hbm [shape: bf16[64,192], index: 17, kind: input, shape index: {}]
  %s18 = inlined_call_operand.hbm [shape: bf16[128,384], index: 18, kind: input, shape index: {}]
  %s19 = inlined_call_operand.vmem [shape: f32[1,128], index: 19, kind: input, shape index: {}]
  %s20 = inlined_call_operand.vmem [shape: f32[64,128], index: 20, kind: output, shape index: {}]
  %s21 = sld [smem:[#allocation0]]
  $region146: #{_lambda_.1} parent=0
    _
  %s23 = ssub.s32 1, %s21
  %s24 = scalar_select 0, %s23, %s21
  $region1: #{_lambda_.1} parent=0
    #allocation2 [shape = 'u8[2048]{0}', space=vmem, size = 0x800, scoped, tag = 'input window, operand 1, single buffered']
    #allocation3 [shape = 's32[1]{0}', space=sflag, size = 0x4, scoped, tag = 'scoped memory for _lambda_.1']
    #allocation4 [shape = 'u8[262144]{0}', space=vmem, size = 0x40000, scoped, tag = 'input window, operand 2, single buffered']
    #allocation5 [shape = 's32[1]{0}', space=sflag, size = 0x4, scoped, tag = 'scoped memory for _lambda_.1']
    #allocation6 [shape = 'u8[1024]{0}', space=vmem, size = 0x400, scoped, tag = 'input window, operand 3, single buffered']
    #allocation7 [shape = 'u8[4096]{0}', space=vmem, size = 0x1000, scoped, tag = 'input window, operand 5, single buffered']
    #allocation8 [shape = 's32[1]{0}', space=sflag, size = 0x4, scoped, tag = 'scoped memory for _lambda_.1']
    #allocation9 [shape = 'u8[262144]{0}', space=vmem, size = 0x40000, scoped, tag = 'input window, operand 6, single buffered']
    #allocation10 [shape = 'u8[512]{0}', space=vmem, size = 0x400, scoped, tag = 'input window, operand 7, single buffered']
    #allocation11 [shape = 's32[1]{0}', space=sflag, size = 0x4, scoped, tag = 'scoped memory for _lambda_.1']
    #allocation12 [shape = 'u8[512]{0}', space=vmem, size = 0x400, scoped, tag = 'input window, operand 8, single buffered']
    #allocation13 [shape = 'u8[8192]{0}', space=vmem, size = 0x2000, scoped, tag = 'input window, operand 9, single buffered']
    #allocation14 [shape = 's32[1]{0}', space=sflag, size = 0x4, scoped, tag = 'scoped memory for _lambda_.1']
    #allocation15 [shape = 'u8[131072]{0}', space=vmem, size = 0x20000, scoped, tag = 'input window, operand 10, single buffered']
    #allocation16 [shape = 'u8[512]{0}', space=vmem, size = 0x400, scoped, tag = 'input window, operand 11, single buffered']
    #allocation17 [shape = 's32[1]{0}', space=sflag, size = 0x4, scoped, tag = 'scoped memory for _lambda_.1']
    #allocation18 [shape = 'u8[512]{0}', space=vmem, size = 0x400, scoped, tag = 'input window, operand 12, single buffered']
    #allocation19 [shape = 'u8[131072]{0}', space=vmem, size = 0x20000, scoped, tag = 'input window, operand 14, single buffered']
    #allocation20 [shape = 's32[1]{0}', space=sflag, size = 0x4, scoped, tag = 'scoped memory for _lambda_.1']
    #allocation21 [shape = 'u8[32768]{0}', space=vmem, size = 0x8000, scoped, tag = 'input window, operand 17, single buffered']
    #allocation22 [shape = 'u8[98304]{0}', space=vmem, size = 0x18000, scoped, tag = 'input window, operand 18, single buffered']
    #allocation23 [shape = 's32[1]{0}', space=sflag, size = 0x4, scoped, tag = 'scoped memory for _lambda_.1']
    %25 = vsyncpa [#allocation3], 0
    %26 = vsyncpa [#allocation5], 0
    %27 = vsyncpa [#allocation8], 0
    %28 = vsyncpa [#allocation11], 0
    %29 = vsyncpa [#allocation14], 0
    %30 = vsyncpa [#allocation17], 0
    %31 = vsyncpa [#allocation20], 0
    %32 = vsyncpa [#allocation23], 0
    // Predicated region
    $region2: #{_lambda_.1} parent=1 // pred_check
      _
    $region3: #{_lambda_.1} parent=1 // pred_check_branch
      %34 = sbr.rel (0) target = $region5
    $region4: #{_lambda_.1} parent=1 // pred_region
      _
    $region5: #{_lambda_.1} parent=1 // pred_fallthru
      _
    // Predicated region
    $region6: #{_lambda_.1} parent=1 // pred_check
      _
    $region7: #{_lambda_.1} parent=1 // pred_check_branch
      %36 = sbr.rel (0) target = $region9
    $region8: #{_lambda_.1} parent=1 // pred_region
      %s38 = ssub.s32 64, 64
      %39 = vsyncadd [#allocation3], %s38
      %s41 = sshll.u32 [#allocation2], 4
      %s42 = int_to_ptr.vmem [resolvable:$true] %s41
      %44 = dma.hbm_to_vmem [thread:$0]  %s1, 64, %s42, [#allocation3]
    $region9: #{_lambda_.1} parent=1 // pred_fallthru
      _
    // Predicated region
    $region10: #{_lambda_.1} parent=1 // pred_check
      _
    $region11: #{_lambda_.1} parent=1 // pred_check_branch
      %46 = sbr.rel (0) target = $region13
    $region12: #{_lambda_.1} parent=1 // pred_region
      %s48 = ssub.s32 8192, 8192
      %49 = vsyncadd [#allocation5], %s48
      %s50 = sshll.u32 [#allocation4], 4
      %s51 = int_to_ptr.vmem [resolvable:$true] %s50
      %56 = dma.hbm_to_vmem [thread:$0]  %s2, 8192, %s51, [#allocation5], 512, 512, 32
    $region13: #{_lambda_.1} parent=1 // pred_fallthru
      _
    // Predicated region
    $region14: #{_lambda_.1} parent=1 // pred_check
      _
    $region15: #{_lambda_.1} parent=1 // pred_check_branch
      %58 = sbr.rel (0) target = $region17
    $region16: #{_lambda_.1} parent=1 // pred_region
      %s60 = ssub.s32 32, 32
      %61 = vsyncadd [#allocation5], %s60
      %s63 = sshll.u32 [#allocation6], 4
      %s64 = int_to_ptr.vmem [resolvable:$true] %s63
      %66 = dma.hbm_to_vmem [thread:$0]  %s3, 32, %s64, [#allocation5]
    $region17: #{_lambda_.1} parent=1 // pred_fallthru
      _
    // Predicated region
    $region18: #{_lambda_.1} parent=1 // pred_check
      _
    $region19: #{_lambda_.1} parent=1 // pred_check_branch
      %68 = sbr.rel (0) target = $region21
    $region20: #{_lambda_.1} parent=1 // pred_region
      _
    $region21: #{_lambda_.1} parent=1 // pred_fallthru
      _
    // Predicated region
    $region22: #{_lambda_.1} parent=1 // pred_check
      _
    $region23: #{_lambda_.1} parent=1 // pred_check_branch
      %70 = sbr.rel (0) target = $region25
    $region24: #{_lambda_.1} parent=1 // pred_region
      %s72 = ssub.s32 128, 128
      %73 = vsyncadd [#allocation8], %s72
      %s74 = sshll.u32 [#allocation7], 4
      %s75 = int_to_ptr.vmem [resolvable:$true] %s74
      %80 = dma.hbm_to_vmem [thread:$0]  %s5, 128, %s75, [#allocation8], 64, 64, 4
    $region25: #{_lambda_.1} parent=1 // pred_fallthru
      _
    // Predicated region
    $region26: #{_lambda_.1} parent=1 // pred_check
      _
    $region27: #{_lambda_.1} parent=1 // pred_check_branch
      %82 = sbr.rel (0) target = $region29
    $region28: #{_lambda_.1} parent=1 // pred_region
      %s84 = ssub.s32 8192, 8192
      %85 = vsyncadd [#allocation8], %s84
      %s86 = sshll.u32 [#allocation9], 4
      %s87 = int_to_ptr.vmem [resolvable:$true] %s86
      %92 = dma.hbm_to_vmem [thread:$0]  %s6, 8192, %s87, [#allocation8], 256, 256, 16
    $region29: #{_lambda_.1} parent=1 // pred_fallthru
      _
    // Predicated region
    $region30: #{_lambda_.1} parent=1 // pred_check
      _
    $region31: #{_lambda_.1} parent=1 // pred_check_branch
      %94 = sbr.rel (0) target = $region33
    $region32: #{_lambda_.1} parent=1 // pred_region
      %s96 = ssub.s32 16, 16
      %97 = vsyncadd [#allocation11], %s96
      %s99 = sshll.u32 [#allocation10], 4
      %s100 = int_to_ptr.vmem [resolvable:$true] %s99
      %102 = dma.hbm_to_vmem [thread:$0]  %s7, 16, %s100, [#allocation11]
    $region33: #{_lambda_.1} parent=1 // pred_fallthru
      _
    // Predicated region
    $region34: #{_lambda_.1} parent=1 // pred_check
      _
    $region35: #{_lambda_.1} parent=1 // pred_check_branch
      %104 = sbr.rel (0) target = $region37
    $region36: #{_lambda_.1} parent=1 // pred_region
      %s106 = ssub.s32 16, 16
      %107 = vsyncadd [#allocation11], %s106
      %s109 = sshll.u32 [#allocation12], 4
      %s110 = int_to_ptr.vmem [resolvable:$true] %s109
      %112 = dma.hbm_to_vmem [thread:$0]  %s8, 16, %s110, [#allocation11]
    $region37: #{_lambda_.1} parent=1 // pred_fallthru
      _
    // Predicated region
    $region38: #{_lambda_.1} parent=1 // pred_check
      _
    $region39: #{_lambda_.1} parent=1 // pred_check_branch
      %114 = sbr.rel (0) target = $region41
    $region40: #{_lambda_.1} parent=1 // pred_region
      %s116 = ssub.s32 256, 256
      %117 = vsyncadd [#allocation14], %s116
      %s118 = sshll.u32 [#allocation13], 4
      %s119 = int_to_ptr.vmem [resolvable:$true] %s118
      %124 = dma.hbm_to_vmem [thread:$0]  %s9, 256, %s119, [#allocation14], 64, 64, 4
    $region41: #{_lambda_.1} parent=1 // pred_fallthru
      _
    // Predicated region
    $region42: #{_lambda_.1} parent=1 // pred_check
      _
    $region43: #{_lambda_.1} parent=1 // pred_check_branch
      %126 = sbr.rel (0) target = $region45
    $region44: #{_lambda_.1} parent=1 // pred_region
      %s128 = ssub.s32 4096, 4096
      %129 = vsyncadd [#allocation14], %s128
      %s130 = sshll.u32 [#allocation15], 4
      %s131 = int_to_ptr.vmem [resolvable:$true] %s130
      %136 = dma.hbm_to_vmem [thread:$0]  %s10, 4096, %s131, [#allocation14], 256, 256, 16
    $region45: #{_lambda_.1} parent=1 // pred_fallthru
      _
    // Predicated region
    $region46: #{_lambda_.1} parent=1 // pred_check
      _
    $region47: #{_lambda_.1} parent=1 // pred_check_branch
      %138 = sbr.rel (0) target = $region49
    $region48: #{_lambda_.1} parent=1 // pred_region
      %s140 = ssub.s32 16, 16
      %141 = vsyncadd [#allocation17], %s140
      %s143 = sshll.u32 [#allocation16], 4
      %s144 = int_to_ptr.vmem [resolvable:$true] %s143
      %146 = dma.hbm_to_vmem [thread:$0]  %s11, 16, %s144, [#allocation17]
    $region49: #{_lambda_.1} parent=1 // pred_fallthru
      _
    // Predicated region
    $region50: #{_lambda_.1} parent=1 // pred_check
      _
    $region51: #{_lambda_.1} parent=1 // pred_check_branch
      %148 = sbr.rel (0) target = $region53
    $region52: #{_lambda_.1} parent=1 // pred_region
      %s150 = ssub.s32 16, 16
      %151 = vsyncadd [#allocation17], %s150
      %s153 = sshll.u32 [#allocation18], 4
      %s154 = int_to_ptr.vmem [resolvable:$true] %s153
      %156 = dma.hbm_to_vmem [thread:$0]  %s12, 16, %s154, [#allocation17]
    $region53: #{_lambda_.1} parent=1 // pred_fallthru
      _
    // Predicated region
    $region54: #{_lambda_.1} parent=1 // pred_check
      _
    $region55: #{_lambda_.1} parent=1 // pred_check_branch
      %158 = sbr.rel (0) target = $region57
    $region56: #{_lambda_.1} parent=1 // pred_region
      _
    $region57: #{_lambda_.1} parent=1 // pred_fallthru
      _
    // Predicated region
    $region58: #{_lambda_.1} parent=1 // pred_check
      _
    $region59: #{_lambda_.1} parent=1 // pred_check_branch
      %160 = sbr.rel (0) target = $region61
    $region60: #{_lambda_.1} parent=1 // pred_region
      %s162 = ssub.s32 4096, 4096
      %163 = vsyncadd [#allocation20], %s162
      %s164 = sshll.u32 [#allocation19], 4
      %s165 = int_to_ptr.vmem [resolvable:$true] %s164
      %170 = dma.hbm_to_vmem [thread:$0]  %s14, 4096, %s165, [#allocation20], 256, 256, 16
    $region61: #{_lambda_.1} parent=1 // pred_fallthru
      _
    // Predicated region
    $region62: #{_lambda_.1} parent=1 // pred_check
      _
    $region63: #{_lambda_.1} parent=1 // pred_check_branch
      %172 = sbr.rel (0) target = $region65
    $region64: #{_lambda_.1} parent=1 // pred_region
      _
    $region65: #{_lambda_.1} parent=1 // pred_fallthru
      _
    // Predicated region
    $region66: #{_lambda_.1} parent=1 // pred_check
      _
    $region67: #{_lambda_.1} parent=1 // pred_check_branch
      %174 = sbr.rel (0) target = $region69
    $region68: #{_lambda_.1} parent=1 // pred_region
      _
    $region69: #{_lambda_.1} parent=1 // pred_fallthru
      _
    // Predicated region
    $region70: #{_lambda_.1} parent=1 // pred_check
      _
    $region71: #{_lambda_.1} parent=1 // pred_check_branch
      %176 = sbr.rel (0) target = $region73
    $region72: #{_lambda_.1} parent=1 // pred_region
      %s178 = ssub.s32 1024, 1024
      %179 = vsyncadd [#allocation20], %s178
      %s180 = sshll.u32 [#allocation21], 4
      %s181 = int_to_ptr.vmem [resolvable:$true] %s180
      %186 = dma.hbm_to_vmem [thread:$0]  %s17, 1024, %s181, [#allocation20], 128, 128, 8
    $region73: #{_lambda_.1} parent=1 // pred_fallthru
      _
    // Predicated region
    $region74: #{_lambda_.1} parent=1 // pred_check
      _
    $region75: #{_lambda_.1} parent=1 // pred_check_branch
      %188 = sbr.rel (0) target = $region77
    $region76: #{_lambda_.1} parent=1 // pred_region
      %s190 = ssub.s32 3072, 3072
      %191 = vsyncadd [#allocation23], %s190
      %s192 = sshll.u32 [#allocation22], 4
      %s193 = int_to_ptr.vmem [resolvable:$true] %s192
      %198 = dma.hbm_to_vmem [thread:$0]  %s18, 3072, %s193, [#allocation23], 192, 192, 12
    $region77: #{_lambda_.1} parent=1 // pred_fallthru
      _
    // Predicated region
    $region78: #{_lambda_.1} parent=1 // pred_check
      _
    $region79: #{_lambda_.1} parent=1 // pred_check_branch
      %200 = sbr.rel (0) target = $region81
    $region80: #{_lambda_.1} parent=1 // pred_region
      _
    $region81: #{_lambda_.1} parent=1 // pred_fallthru
      _
    // Predicated region
    $region82: #{_lambda_.1} parent=1 // pred_check
      _
    $region83: #{_lambda_.1} parent=1 // pred_check_branch
      %202 = sbr.rel (0) target = $region85
    $region84: #{_lambda_.1} parent=1 // pred_region
      %203 = dma.done [#allocation3], 64
    $region85: #{_lambda_.1} parent=1 // pred_fallthru
      _
    // Predicated region
    $region86: #{_lambda_.1} parent=1 // pred_check
      _
    $region87: #{_lambda_.1} parent=1 // pred_check_branch
      %205 = sbr.rel (0) target = $region89
    $region88: #{_lambda_.1} parent=1 // pred_region
      %206 = dma.done [#allocation5], 8192
    $region89: #{_lambda_.1} parent=1 // pred_fallthru
      _
    // Predicated region
    $region90: #{_lambda_.1} parent=1 // pred_check
      _
    $region91: #{_lambda_.1} parent=1 // pred_check_branch
      %208 = sbr.rel (0) target = $region93
    $region92: #{_lambda_.1} parent=1 // pred_region
      %209 = dma.done [#allocation5], 32
    $region93: #{_lambda_.1} parent=1 // pred_fallthru
      _
    // Predicated region
    $region94: #{_lambda_.1} parent=1 // pred_check
      _
    $region95: #{_lambda_.1} parent=1 // pred_check_branch
      %211 = sbr.rel (0) target = $region97
    $region96: #{_lambda_.1} parent=1 // pred_region
      %212 = dma.done [#allocation8], 128
    $region97: #{_lambda_.1} parent=1 // pred_fallthru
      _
    // Predicated region
    $region98: #{_lambda_.1} parent=1 // pred_check
      _
    $region99: #{_lambda_.1} parent=1 // pred_check_branch
      %214 = sbr.rel (0) target = $region101
    $region100: #{_lambda_.1} parent=1 // pred_region
      %215 = dma.done [#allocation8], 8192
    $region101: #{_lambda_.1} parent=1 // pred_fallthru
      _
    // Predicated region
    $region102: #{_lambda_.1} parent=1 // pred_check
      _
    $region103: #{_lambda_.1} parent=1 // pred_check_branch
      %217 = sbr.rel (0) target = $region105
    $region104: #{_lambda_.1} parent=1 // pred_region
      %218 = dma.done [#allocation11], 16
    $region105: #{_lambda_.1} parent=1 // pred_fallthru
      _
    // Predicated region
    $region106: #{_lambda_.1} parent=1 // pred_check
      _
    $region107: #{_lambda_.1} parent=1 // pred_check_branch
      %220 = sbr.rel (0) target = $region109
    $region108: #{_lambda_.1} parent=1 // pred_region
      %221 = dma.done [#allocation11], 16
    $region109: #{_lambda_.1} parent=1 // pred_fallthru
      _
    // Predicated region
    $region110: #{_lambda_.1} parent=1 // pred_check
      _
    $region111: #{_lambda_.1} parent=1 // pred_check_branch
      %223 = sbr.rel (0) target = $region113
    $region112: #{_lambda_.1} parent=1 // pred_region
      %224 = dma.done [#allocation14], 256
    $region113: #{_lambda_.1} parent=1 // pred_fallthru
      _
    // Predicated region
    $region114: #{_lambda_.1} parent=1 // pred_check
      _
    $region115: #{_lambda_.1} parent=1 // pred_check_branch
      %226 = sbr.rel (0) target = $region117
    $region116: #{_lambda_.1} parent=1 // pred_region
      %227 = dma.done [#allocation14], 4096
    $region117: #{_lambda_.1} parent=1 // pred_fallthru
      _
    // Predicated region
    $region118: #{_lambda_.1} parent=1 // pred_check
      _
    $region119: #{_lambda_.1} parent=1 // pred_check_branch
      %229 = sbr.rel (0) target = $region121
    $region120: #{_lambda_.1} parent=1 // pred_region
      %230 = dma.done [#allocation17], 16
    $region121: #{_lambda_.1} parent=1 // pred_fallthru
      _
    // Predicated region
    $region122: #{_lambda_.1} parent=1 // pred_check
      _
    $region123: #{_lambda_.1} parent=1 // pred_check_branch
      %232 = sbr.rel (0) target = $region125
    $region124: #{_lambda_.1} parent=1 // pred_region
      %233 = dma.done [#allocation17], 16
    $region125: #{_lambda_.1} parent=1 // pred_fallthru
      _
    // Predicated region
    $region126: #{_lambda_.1} parent=1 // pred_check
      _
    $region127: #{_lambda_.1} parent=1 // pred_check_branch
      %235 = sbr.rel (0) target = $region129
    $region128: #{_lambda_.1} parent=1 // pred_region
      %236 = dma.done [#allocation20], 4096
    $region129: #{_lambda_.1} parent=1 // pred_fallthru
      _
    // Predicated region
    $region130: #{_lambda_.1} parent=1 // pred_check
      _
    $region131: #{_lambda_.1} parent=1 // pred_check_branch
      %238 = sbr.rel (0) target = $region133
    $region132: #{_lambda_.1} parent=1 // pred_region
      %239 = dma.done [#allocation20], 1024
    $region133: #{_lambda_.1} parent=1 // pred_fallthru
      _
    // Predicated region
    $region134: #{_lambda_.1} parent=1 // pred_check
      _
    $region135: #{_lambda_.1} parent=1 // pred_check_branch
      %241 = sbr.rel (0) target = $region137
    $region136: #{_lambda_.1} parent=1 // pred_region
      %242 = dma.done [#allocation23], 3072
    $region137: #{_lambda_.1} parent=1 // pred_fallthru
      _
    %v244 = vld [vmem:[%s0] sm:$0xf]
    %v245 = vld [vmem:[#allocation4] sm:$0xff]
    %v246 = vld [vmem:[#allocation4 + $0x8] sm:$0xff]
    %v247 = vld [vmem:[#allocation4 + $0x10] sm:$0xff]
    %v248 = vld [vmem:[#allocation4 + $0x18] sm:$0xff]
    %v249 = vld [vmem:[#allocation4 + $0x20] sm:$0xff]
    %v250 = vld [vmem:[#allocation4 + $0x28] sm:$0xff]
    %v251 = vld [vmem:[#allocation4 + $0x30] sm:$0xff]
    %v252 = vld [vmem:[#allocation4 + $0x38] sm:$0xff]
    %v253 = vld [vmem:[#allocation4 + $0x40] sm:$0xff]
    %v254 = vld [vmem:[#allocation4 + $0x48] sm:$0xff]
    %v255 = vld [vmem:[#allocation4 + $0x50] sm:$0xff]
    %v256 = vld [vmem:[#allocation4 + $0x58] sm:$0xff]
    %v257 = vld [vmem:[#allocation4 + $0x60] sm:$0xff]
    %v258 = vld [vmem:[#allocation4 + $0x68] sm:$0xff]
    %v259 = vld [vmem:[#allocation4 + $0x70] sm:$0xff]
    %v260 = vld [vmem:[#allocation4 + $0x78] sm:$0xff]
    %v261 = vld [vmem:[#allocation4 + $0x80] sm:$0xff]
    %v262 = vld [vmem:[#allocation4 + $0x88] sm:$0xff]
    %v263 = vld [vmem:[#allocation4 + $0x90] sm:$0xff]
    %v264 = vld [vmem:[#allocation4 + $0x98] sm:$0xff]
    %v265 = vld [vmem:[#allocation4 + $0xa0] sm:$0xff]
    %v266 = vld [vmem:[#allocation4 + $0xa8] sm:$0xff]
    %v267 = vld [vmem:[#allocation4 + $0xb0] sm:$0xff]
    %v268 = vld [vmem:[#allocation4 + $0xb8] sm:$0xff]
    %v269 = vld [vmem:[#allocation4 + $0xc0] sm:$0xff]
    %v270 = vld [vmem:[#allocation4 + $0xc8] sm:$0xff]
    %v271 = vld [vmem:[#allocation4 + $0xd0] sm:$0xff]
    %v272 = vld [vmem:[#allocation4 + $0xd8] sm:$0xff]
    %v273 = vld [vmem:[#allocation4 + $0xe0] sm:$0xff]
    %v274 = vld [vmem:[#allocation4 + $0xe8] sm:$0xff]
    %v275 = vld [vmem:[#allocation4 + $0xf0] sm:$0xff]
    %v276 = vld [vmem:[#allocation4 + $0xf8] sm:$0xff]
    %v277 = vld [vmem:[#allocation4 + $0x100] sm:$0xff]
    %v278 = vld [vmem:[#allocation4 + $0x108] sm:$0xff]
    %v279 = vld [vmem:[#allocation4 + $0x110] sm:$0xff]
    %v280 = vld [vmem:[#allocation4 + $0x118] sm:$0xff]
    %v281 = vld [vmem:[#allocation4 + $0x120] sm:$0xff]
    %v282 = vld [vmem:[#allocation4 + $0x128] sm:$0xff]
    %v283 = vld [vmem:[#allocation4 + $0x130] sm:$0xff]
    %v284 = vld [vmem:[#allocation4 + $0x138] sm:$0xff]
    %v285 = vld [vmem:[#allocation4 + $0x140] sm:$0xff]
    %v286 = vld [vmem:[#allocation4 + $0x148] sm:$0xff]
    %v287 = vld [vmem:[#allocation4 + $0x150] sm:$0xff]
    %v288 = vld [vmem:[#allocation4 + $0x158] sm:$0xff]
    %v289 = vld [vmem:[#allocation4 + $0x160] sm:$0xff]
    %v290 = vld [vmem:[#allocation4 + $0x168] sm:$0xff]
    %v291 = vld [vmem:[#allocation4 + $0x170] sm:$0xff]
    %v292 = vld [vmem:[#allocation4 + $0x178] sm:$0xff]
    %v293 = vld [vmem:[#allocation4 + $0x180] sm:$0xff]
    %v294 = vld [vmem:[#allocation4 + $0x188] sm:$0xff]
    %v295 = vld [vmem:[#allocation4 + $0x190] sm:$0xff]
    %v296 = vld [vmem:[#allocation4 + $0x198] sm:$0xff]
    %v297 = vld [vmem:[#allocation4 + $0x1a0] sm:$0xff]
    %v298 = vld [vmem:[#allocation4 + $0x1a8] sm:$0xff]
    %v299 = vld [vmem:[#allocation4 + $0x1b0] sm:$0xff]
    %v300 = vld [vmem:[#allocation4 + $0x1b8] sm:$0xff]
    %v301 = vld [vmem:[#allocation4 + $0x1c0] sm:$0xff]
    %v302 = vld [vmem:[#allocation4 + $0x1c8] sm:$0xff]
    %v303 = vld [vmem:[#allocation4 + $0x1d0] sm:$0xff]
    %v304 = vld [vmem:[#allocation4 + $0x1d8] sm:$0xff]
    %v305 = vld [vmem:[#allocation4 + $0x1e0] sm:$0xff]
    %v306 = vld [vmem:[#allocation4 + $0x1e8] sm:$0xff]
    %v307 = vld [vmem:[#allocation4 + $0x1f0] sm:$0xff]
    %v308 = vld [vmem:[#allocation4 + $0x1f8] sm:$0xff]
    %v373 = vunpack.c.l.b16 %v245
    %v374 = vunpack.c.h.b16 %v245
    %v375 = vunpack.c.l.b16 %v246
    %v376 = vunpack.c.h.b16 %v246
    %v377 = vunpack.c.l.b16 %v247
    %v378 = vunpack.c.h.b16 %v247
    %v379 = vunpack.c.l.b16 %v248
    %v380 = vunpack.c.h.b16 %v248
    %v381 = vunpack.c.l.b16 %v249
    %v382 = vunpack.c.h.b16 %v249
    %v383 = vunpack.c.l.b16 %v250
    %v384 = vunpack.c.h.b16 %v250
    %v385 = vunpack.c.l.b16 %v251
    %v386 = vunpack.c.h.b16 %v251
    %v387 = vunpack.c.l.b16 %v252
    %v388 = vunpack.c.h.b16 %v252
    %v389 = vunpack.c.l.b16 %v253
    %v390 = vunpack.c.h.b16 %v253
    %v391 = vunpack.c.l.b16 %v254
    %v392 = vunpack.c.h.b16 %v254
    %v393 = vunpack.c.l.b16 %v255
    %v394 = vunpack.c.h.b16 %v255
    %v395 = vunpack.c.l.b16 %v256
    %v396 = vunpack.c.h.b16 %v256
    %v397 = vunpack.c.l.b16 %v257
    %v398 = vunpack.c.h.b16 %v257
    %v399 = vunpack.c.l.b16 %v258
    %v400 = vunpack.c.h.b16 %v258
    %v401 = vunpack.c.l.b16 %v259
    %v402 = vunpack.c.h.b16 %v259
    %v403 = vunpack.c.l.b16 %v260
    %v404 = vunpack.c.h.b16 %v260
    %v405 = vunpack.c.l.b16 %v261
    %v406 = vunpack.c.h.b16 %v261
    %v407 = vunpack.c.l.b16 %v262
    %v408 = vunpack.c.h.b16 %v262
    %v409 = vunpack.c.l.b16 %v263
    %v410 = vunpack.c.h.b16 %v263
    %v411 = vunpack.c.l.b16 %v264
    %v412 = vunpack.c.h.b16 %v264
    %v413 = vunpack.c.l.b16 %v265
    %v414 = vunpack.c.h.b16 %v265
    %v415 = vunpack.c.l.b16 %v266
    %v416 = vunpack.c.h.b16 %v266
    %v417 = vunpack.c.l.b16 %v267
    %v418 = vunpack.c.h.b16 %v267
    %v419 = vunpack.c.l.b16 %v268
    %v420 = vunpack.c.h.b16 %v268
    %v421 = vunpack.c.l.b16 %v269
    %v422 = vunpack.c.h.b16 %v269
    %v423 = vunpack.c.l.b16 %v270
    %v424 = vunpack.c.h.b16 %v270
    %v425 = vunpack.c.l.b16 %v271
    %v426 = vunpack.c.h.b16 %v271
    %v427 = vunpack.c.l.b16 %v272
    %v428 = vunpack.c.h.b16 %v272
    %v429 = vunpack.c.l.b16 %v273
    %v430 = vunpack.c.h.b16 %v273
    %v431 = vunpack.c.l.b16 %v274
    %v432 = vunpack.c.h.b16 %v274
    %v433 = vunpack.c.l.b16 %v275
    %v434 = vunpack.c.h.b16 %v275
    %v435 = vunpack.c.l.b16 %v276
    %v436 = vunpack.c.h.b16 %v276
    %v437 = vunpack.c.l.b16 %v277
    %v438 = vunpack.c.h.b16 %v277
    %v439 = vunpack.c.l.b16 %v278
    %v440 = vunpack.c.h.b16 %v278
    %v441 = vunpack.c.l.b16 %v279
    %v442 = vunpack.c.h.b16 %v279
    %v443 = vunpack.c.l.b16 %v280
    %v444 = vunpack.c.h.b16 %v280
    %v445 = vunpack.c.l.b16 %v281
    %v446 = vunpack.c.h.b16 %v281
    %v447 = vunpack.c.l.b16 %v282
    %v448 = vunpack.c.h.b16 %v282
    %v449 = vunpack.c.l.b16 %v283
    %v450 = vunpack.c.h.b16 %v283
    %v451 = vunpack.c.l.b16 %v284
    %v452 = vunpack.c.h.b16 %v284
    %v453 = vunpack.c.l.b16 %v285
    %v454 = vunpack.c.h.b16 %v285
    %v455 = vunpack.c.l.b16 %v286
    %v456 = vunpack.c.h.b16 %v286
    %v457 = vunpack.c.l.b16 %v287
    %v458 = vunpack.c.h.b16 %v287
    %v459 = vunpack.c.l.b16 %v288
    %v460 = vunpack.c.h.b16 %v288
    %v461 = vunpack.c.l.b16 %v289
    %v462 = vunpack.c.h.b16 %v289
    %v463 = vunpack.c.l.b16 %v290
    %v464 = vunpack.c.h.b16 %v290
    %v465 = vunpack.c.l.b16 %v291
    %v466 = vunpack.c.h.b16 %v291
    %v467 = vunpack.c.l.b16 %v292
    %v468 = vunpack.c.h.b16 %v292
    %v469 = vunpack.c.l.b16 %v293
    %v470 = vunpack.c.h.b16 %v293
    %v471 = vunpack.c.l.b16 %v294
    %v472 = vunpack.c.h.b16 %v294
    %v473 = vunpack.c.l.b16 %v295
    %v474 = vunpack.c.h.b16 %v295
    %v475 = vunpack.c.l.b16 %v296
    %v476 = vunpack.c.h.b16 %v296
    %v477 = vunpack.c.l.b16 %v297
    %v478 = vunpack.c.h.b16 %v297
    %v479 = vunpack.c.l.b16 %v298
    %v480 = vunpack.c.h.b16 %v298
    %v481 = vunpack.c.l.b16 %v299
    %v482 = vunpack.c.h.b16 %v299
    %v483 = vunpack.c.l.b16 %v300
    %v484 = vunpack.c.h.b16 %v300
    %v485 = vunpack.c.l.b16 %v301
    %v486 = vunpack.c.h.b16 %v301
    %v487 = vunpack.c.l.b16 %v302
    %v488 = vunpack.c.h.b16 %v302
    %v489 = vunpack.c.l.b16 %v303
    %v490 = vunpack.c.h.b16 %v303
    %v491 = vunpack.c.l.b16 %v304
    %v492 = vunpack.c.h.b16 %v304
    %v493 = vunpack.c.l.b16 %v305
    %v494 = vunpack.c.h.b16 %v305
    %v495 = vunpack.c.l.b16 %v306
    %v496 = vunpack.c.h.b16 %v306
    %v497 = vunpack.c.l.b16 %v307
    %v498 = vunpack.c.h.b16 %v307
    %v499 = vunpack.c.l.b16 %v308
    %v500 = vunpack.c.h.b16 %v308
    %v501 = vpack.c.b16 %v381, %v373
    %v502 = vpack.c.b16 %v382, %v374
    %v503 = vpack.c.b16 %v383, %v375
    %v504 = vpack.c.b16 %v384, %v376
    %v505 = vpack.c.b16 %v385, %v377
    %v506 = vpack.c.b16 %v386, %v378
    %v507 = vpack.c.b16 %v387, %v379
    %v508 = vpack.c.b16 %v388, %v380
    %v509 = vpack.c.b16 %v397, %v389
    %v510 = vpack.c.b16 %v398, %v390
    %v511 = vpack.c.b16 %v399, %v391
    %v512 = vpack.c.b16 %v400, %v392
    %v513 = vpack.c.b16 %v401, %v393
    %v514 = vpack.c.b16 %v402, %v394
    %v515 = vpack.c.b16 %v403, %v395
    %v516 = vpack.c.b16 %v404, %v396
    %v517 = vpack.c.b16 %v413, %v405
    %v518 = vpack.c.b16 %v414, %v406
    %v519 = vpack.c.b16 %v415, %v407
    %v520 = vpack.c.b16 %v416, %v408
    %v521 = vpack.c.b16 %v417, %v409
    %v522 = vpack.c.b16 %v418, %v410
    %v523 = vpack.c.b16 %v419, %v411
    %v524 = vpack.c.b16 %v420, %v412
    %v525 = vpack.c.b16 %v429, %v421
    %v526 = vpack.c.b16 %v430, %v422
    %v527 = vpack.c.b16 %v431, %v423
    %v528 = vpack.c.b16 %v432, %v424
    %v529 = vpack.c.b16 %v433, %v425
    %v530 = vpack.c.b16 %v434, %v426
    %v531 = vpack.c.b16 %v435, %v427
    %v532 = vpack.c.b16 %v436, %v428
    %v533 = vpack.c.b16 %v445, %v437
    %v534 = vpack.c.b16 %v446, %v438
    %v535 = vpack.c.b16 %v447, %v439
    %v536 = vpack.c.b16 %v448, %v440
    %v537 = vpack.c.b16 %v449, %v441
    %v538 = vpack.c.b16 %v450, %v442
    %v539 = vpack.c.b16 %v451, %v443
    %v540 = vpack.c.b16 %v452, %v444
    %v541 = vpack.c.b16 %v461, %v453
    %v542 = vpack.c.b16 %v462, %v454
    %v543 = vpack.c.b16 %v463, %v455
    %v544 = vpack.c.b16 %v464, %v456
    %v545 = vpack.c.b16 %v465, %v457
    %v546 = vpack.c.b16 %v466, %v458
    %v547 = vpack.c.b16 %v467, %v459
    %v548 = vpack.c.b16 %v468, %v460
    %v549 = vpack.c.b16 %v477, %v469
    %v550 = vpack.c.b16 %v478, %v470
    %v551 = vpack.c.b16 %v479, %v471
    %v552 = vpack.c.b16 %v480, %v472
    %v553 = vpack.c.b16 %v481, %v473
    %v554 = vpack.c.b16 %v482, %v474
    %v555 = vpack.c.b16 %v483, %v475
    %v556 = vpack.c.b16 %v484, %v476
    %v557 = vpack.c.b16 %v493, %v485
    %v558 = vpack.c.b16 %v494, %v486
    %v559 = vpack.c.b16 %v495, %v487
    %v560 = vpack.c.b16 %v496, %v488
    %v561 = vpack.c.b16 %v497, %v489
    %v562 = vpack.c.b16 %v498, %v490
    %v563 = vpack.c.b16 %v499, %v491
    %v564 = vpack.c.b16 %v500, %v492
    %629 = vmatprep.subr.bf16.mxu0 %v558
    %630 = vmatpush1.bf16.msra.mxu0 %v557
    %631 = vmatprep.subr.bf16.mxu0 %v550
    %632 = vmatpush1.bf16.msra.mxu0 %v549
    %633 = vmatprep.subr.bf16.mxu0 %v542
    %634 = vmatpush1.bf16.msra.mxu0 %v541
    %635 = vmatprep.subr.bf16.mxu0 %v534
    %636 = vmatpush1.bf16.msra.mxu0 %v533
    %637 = vmatprep.subr.bf16.mxu0 %v526
    %638 = vmatpush1.bf16.msra.mxu0 %v525
    %639 = vmatprep.subr.bf16.mxu0 %v518
    %640 = vmatpush1.bf16.msra.mxu0 %v517
    %641 = vmatprep.subr.bf16.mxu0 %v510
    %642 = vmatpush1.bf16.msra.mxu0 %v509
    %643 = vmatprep.subr.bf16.mxu0 %v502
    %644 = vmatpush1.bf16.msra.mxu0 %v501
    %645 = vmatprep.subr.bf16.mxu0 0
    %646 = vmatpush2.bf16.msra.mxu0 0
    %647 = vmatprep.subr.bf16.mxu0 0
    %648 = vmatpush2.bf16.msra.mxu0 0
    %649 = vmatprep.subr.bf16.mxu0 0
    %650 = vmatpush2.bf16.msra.mxu0 0
    %651 = vmatprep.subr.bf16.mxu0 0
    %652 = vmatpush2.bf16.msra.mxu0 0
    %653 = vmatprep.subr.bf16.mxu0 0
    %654 = vmatpush2.bf16.msra.mxu0 0
    %655 = vmatprep.subr.bf16.mxu0 0
    %656 = vmatpush2.bf16.msra.mxu0 0
    %657 = vmatprep.subr.bf16.mxu0 0
    %658 = vmatpush2.bf16.msra.mxu0 0
    %659 = vmatprep.subr.bf16.mxu0 0
    %660 = vmatpush2.bf16.msra.mxu0 0
    %661 = vmatprep.mubr.bf16.mxu0 0
    %662 = vmatmul.mubr.bf16.gmra.mxu0 %v244
    %v663 = vpop.f32.mrf.mxu0
    %v664 = vadd.f32 0.0, %v663
    %v665 = vpop.f32.mrf.mxu0
    %v666 = vadd.f32 0.0, %v665
    %v667 = vpop.f32.mrf.mxu0
    %v668 = vpop.f32.mrf.mxu0
    %669 = vdwg.mxu0
    %670 = vmatprep.subr.bf16.mxu0 %v560
    %671 = vmatpush1.bf16.msra.mxu0 %v559
    %672 = vmatprep.subr.bf16.mxu0 %v552
    %673 = vmatpush1.bf16.msra.mxu0 %v551
    %674 = vmatprep.subr.bf16.mxu0 %v544
    %675 = vmatpush1.bf16.msra.mxu0 %v543
    %676 = vmatprep.subr.bf16.mxu0 %v536
    %677 = vmatpush1.bf16.msra.mxu0 %v535
    %678 = vmatprep.subr.bf16.mxu0 %v528
    %679 = vmatpush1.bf16.msra.mxu0 %v527
    %680 = vmatprep.subr.bf16.mxu0 %v520
    %681 = vmatpush1.bf16.msra.mxu0 %v519
    %682 = vmatprep.subr.bf16.mxu0 %v512
    %683 = vmatpush1.bf16.msra.mxu0 %v511
    %684 = vmatprep.subr.bf16.mxu0 %v504
    %685 = vmatpush1.bf16.msra.mxu0 %v503
    %686 = vmatprep.subr.bf16.mxu0 0
    %687 = vmatpush2.bf16.msra.mxu0 0
    %688 = vmatprep.subr.bf16.mxu0 0
    %689 = vmatpush2.bf16.msra.mxu0 0
    %690 = vmatprep.subr.bf16.mxu0 0
    %691 = vmatpush2.bf16.msra.mxu0 0
    %692 = vmatprep.subr.bf16.mxu0 0
    %693 = vmatpush2.bf16.msra.mxu0 0
    %694 = vmatprep.subr.bf16.mxu0 0
    %695 = vmatpush2.bf16.msra.mxu0 0
    %696 = vmatprep.subr.bf16.mxu0 0
    %697 = vmatpush2.bf16.msra.mxu0 0
    %698 = vmatprep.subr.bf16.mxu0 0
    %699 = vmatpush2.bf16.msra.mxu0 0
    %700 = vmatprep.subr.bf16.mxu0 0
    %701 = vmatpush2.bf16.msra.mxu0 0
    %702 = vmatprep.mubr.bf16.mxu0 0
    %703 = vmatmul.mubr.bf16.gmra.mxu0 %v244
    %v704 = vpop.f32.mrf.mxu0
    %v705 = vadd.f32 0.0, %v704
    %v706 = vpop.f32.mrf.mxu0
    %v707 = vadd.f32 0.0, %v706
    %v708 = vpop.f32.mrf.mxu0
    %v709 = vpop.f32.mrf.mxu0
    %710 = vdwg.mxu0
    %711 = vmatprep.subr.bf16.mxu0 %v562
    %712 = vmatpush1.bf16.msra.mxu0 %v561
    %713 = vmatprep.subr.bf16.mxu0 %v554
    %714 = vmatpush1.bf16.msra.mxu0 %v553
    %715 = vmatprep.subr.bf16.mxu0 %v546
    %716 = vmatpush1.bf16.msra.mxu0 %v545
    %717 = vmatprep.subr.bf16.mxu0 %v538
    %718 = vmatpush1.bf16.msra.mxu0 %v537
    %719 = vmatprep.subr.bf16.mxu0 %v530
    %720 = vmatpush1.bf16.msra.mxu0 %v529
    %721 = vmatprep.subr.bf16.mxu0 %v522
    %722 = vmatpush1.bf16.msra.mxu0 %v521
    %723 = vmatprep.subr.bf16.mxu0 %v514
    %724 = vmatpush1.bf16.msra.mxu0 %v513
    %725 = vmatprep.subr.bf16.mxu0 %v506
    %726 = vmatpush1.bf16.msra.mxu0 %v505
    %727 = vmatprep.subr.bf16.mxu0 0
    %728 = vmatpush2.bf16.msra.mxu0 0
    %729 = vmatprep.subr.bf16.mxu0 0
    %730 = vmatpush2.bf16.msra.mxu0 0
    %731 = vmatprep.subr.bf16.mxu0 0
    %732 = vmatpush2.bf16.msra.mxu0 0
    %733 = vmatprep.subr.bf16.mxu0 0
    %734 = vmatpush2.bf16.msra.mxu0 0
    %735 = vmatprep.subr.bf16.mxu0 0
    %736 = vmatpush2.bf16.msra.mxu0 0
    %737 = vmatprep.subr.bf16.mxu0 0
    %738 = vmatpush2.bf16.msra.mxu0 0
    %739 = vmatprep.subr.bf16.mxu0 0
    %740 = vmatpush2.bf16.msra.mxu0 0
    %741 = vmatprep.subr.bf16.mxu0 0
    %742 = vmatpush2.bf16.msra.mxu0 0
    %743 = vmatprep.mubr.bf16.mxu0 0
    %744 = vmatmul.mubr.bf16.gmra.mxu0 %v244
    %v745 = vpop.f32.mrf.mxu0
    %v746 = vadd.f32 0.0, %v745
    %v747 = vpop.f32.mrf.mxu0
    %v748 = vadd.f32 0.0, %v747
    %v749 = vpop.f32.mrf.mxu0
    %v750 = vpop.f32.mrf.mxu0
    %751 = vdwg.mxu0
    %752 = vmatprep.subr.bf16.mxu0 %v564
    %753 = vmatpush1.bf16.msra.mxu0 %v563
    %754 = vmatprep.subr.bf16.mxu0 %v556
    %755 = vmatpush1.bf16.msra.mxu0 %v555
    %756 = vmatprep.subr.bf16.mxu0 %v548
    %757 = vmatpush1.bf16.msra.mxu0 %v547
    %758 = vmatprep.subr.bf16.mxu0 %v540
    %759 = vmatpush1.bf16.msra.mxu0 %v539
    %760 = vmatprep.subr.bf16.mxu0 %v532
    %761 = vmatpush1.bf16.msra.mxu0 %v531
    %762 = vmatprep.subr.bf16.mxu0 %v524
    %763 = vmatpush1.bf16.msra.mxu0 %v523
    %764 = vmatprep.subr.bf16.mxu0 %v516
    %765 = vmatpush1.bf16.msra.mxu0 %v515
    %766 = vmatprep.subr.bf16.mxu0 %v508
    %767 = vmatpush1.bf16.msra.mxu0 %v507
    %768 = vmatprep.subr.bf16.mxu0 0
    %769 = vmatpush2.bf16.msra.mxu0 0
    %770 = vmatprep.subr.bf16.mxu0 0
    %771 = vmatpush2.bf16.msra.mxu0 0
    %772 = vmatprep.subr.bf16.mxu0 0
    %773 = vmatpush2.bf16.msra.mxu0 0
    %774 = vmatprep.subr.bf16.mxu0 0
    %775 = vmatpush2.bf16.msra.mxu0 0
    %776 = vmatprep.subr.bf16.mxu0 0
    %777 = vmatpush2.bf16.msra.mxu0 0
    %778 = vmatprep.subr.bf16.mxu0 0
    %779 = vmatpush2.bf16.msra.mxu0 0
    %780 = vmatprep.subr.bf16.mxu0 0
    %781 = vmatpush2.bf16.msra.mxu0 0
    %782 = vmatprep.subr.bf16.mxu0 0
    %783 = vmatpush2.bf16.msra.mxu0 0
    %784 = vmatprep.mubr.bf16.mxu0 0
    %785 = vmatmul.mubr.bf16.gmra.mxu0 %v244
    %v786 = vpop.f32.mrf.mxu0
    %v787 = vadd.f32 0.0, %v786
    %v788 = vpop.f32.mrf.mxu0
    %v789 = vadd.f32 0.0, %v788
    %v790 = vpop.f32.mrf.mxu0
    %v791 = vpop.f32.mrf.mxu0
    %792 = vdwg.mxu0
    %v793 = vld [vmem:[#allocation2] sm:$0xf]
    %v794 = vpack.c.bf16 %v705, %v664
    %v795 = vpack.c.bf16 %v707, %v666
    %v796 = vpack.c.bf16 %v787, %v746
    %v797 = vpack.c.bf16 %v789, %v748
    %vm798 = vcmask 261120
    %v800 = vsel %vm798, %v793, 0
    %802 = vmatprep.subr.bf16.mxu0 0
    %803 = vmatpush1.bf16.msra.mxu0 0
    %804 = vmatprep.subr.bf16.mxu0 0
    %805 = vmatpush1.bf16.msra.mxu0 0
    %806 = vmatprep.subr.bf16.mxu0 0
    %807 = vmatpush1.bf16.msra.mxu0 0
    %808 = vmatprep.subr.bf16.mxu0 0
    %809 = vmatpush1.bf16.msra.mxu0 0
    %810 = vmatprep.subr.bf16.mxu0 0
    %811 = vmatpush1.bf16.msra.mxu0 0
    %812 = vmatprep.subr.bf16.mxu0 0
    %813 = vmatpush1.bf16.msra.mxu0 0
    %814 = vmatprep.subr.bf16.mxu0 %v797
    %815 = vmatpush1.bf16.msra.mxu0 %v796
    %816 = vmatprep.subr.bf16.mxu0 %v795
    %817 = vmatpush1.bf16.msra.mxu0 %v794
    %818 = vmatprep.subr.bf16.mxu0 0
    %819 = vmatpush2.bf16.msra.mxu0 0
    %820 = vmatprep.subr.bf16.mxu0 0
    %821 = vmatpush2.bf16.msra.mxu0 0
    %822 = vmatprep.subr.bf16.mxu0 0
    %823 = vmatpush2.bf16.msra.mxu0 0
    %824 = vmatprep.subr.bf16.mxu0 0
    %825 = vmatpush2.bf16.msra.mxu0 0
    %826 = vmatprep.subr.bf16.mxu0 0
    %827 = vmatpush2.bf16.msra.mxu0 0
    %828 = vmatprep.subr.bf16.mxu0 0
    %829 = vmatpush2.bf16.msra.mxu0 0
    %830 = vmatprep.subr.bf16.mxu0 0
    %831 = vmatpush2.bf16.msra.mxu0 0
    %832 = vmatprep.subr.bf16.mxu0 0
    %833 = vmatpush2.bf16.msra.mxu0 0
    %834 = vmatprep.mubr.bf16.mxu0 0
    %835 = vmatmul.mubr.bf16.gmra.mxu0 %v800
    %v836 = vpop.f32.mrf.mxu0
    %v837 = vadd.f32 0.0, %v836
    %v838 = vpop.f32.mrf.mxu0
    %v839 = vadd.f32 0.0, %v838
    %v840 = vpop.f32.mrf.mxu0
    %v841 = vpop.f32.mrf.mxu0
    %842 = vdwg.mxu0
    %v843 = vrot.slane %v837, 4
    %v844 = vadd.f32 %v837, %v843
    %v845 = vrot.slane %v844, 2
    %v846 = vadd.f32 %v844, %v845
    %v847 = vrot.slane %v846, 1
    %v848 = vadd.f32 %v846, %v847
    %v849 = vrot.slane %v839, 4
    %v850 = vadd.f32 %v839, %v849
    %v851 = vrot.slane %v850, 2
    %v852 = vadd.f32 %v850, %v851
    %v853 = vrot.slane %v852, 1
    %v854 = vadd.f32 %v852, %v853
    %v855 = vmul.f32 %v848, 0.125
    %v856 = vmul.f32 %v854, 0.125
    %v857 = vsub.f32 %v837, %v855
    %v858 = vsub.f32 %v839, %v856
    %v859 = vmul.f32 %v857, %v857
    %v860 = vmul.f32 %v858, %v858
    %v861 = vrot.slane %v859, 4
    %v862 = vadd.f32 %v859, %v861
    %v863 = vrot.slane %v862, 2
    %v864 = vadd.f32 %v862, %v863
    %v865 = vrot.slane %v864, 1
    %v866 = vadd.f32 %v864, %v865
    %v867 = vrot.slane %v860, 4
    %v868 = vadd.f32 %v860, %v867
    %v869 = vrot.slane %v868, 2
    %v870 = vadd.f32 %v868, %v869
    %v871 = vrot.slane %v870, 1
    %v872 = vadd.f32 %v870, %v871
    %v873 = vmul.f32 %v866, 0.125
    %v874 = vmul.f32 %v872, 0.125
    %v875 = vadd.f32 %v873, 1e-05
    %v876 = vadd.f32 %v874, 1e-05
    %v877 = vrsqrt.pop %v875
    %v878 = vrsqrt.pop %v876
    %v879 = vld [vmem:[#allocation6] sm:$0x3]
    %v881 = vlaneseq
    %v882 = vshrl.u32 %v881, 7
    %v883 = vsub.s32 0, %v882
    %v884 = vrot.slane %v879, %v883
    %v885 = vlaneseq
    %v886 = vshrl.u32 %v885, 7
    %v887 = vsub.s32 1, %v886
    %v888 = vrot.slane %v879, %v887
    %v891 = vmul.f32 %v877, %v884
    %v892 = vmul.f32 %v878, %v888
    %v893 = vlaneseq
    %v894 = vshrl.u32 %v893, 7
    %v895 = vsub.s32 0, %v894
    %v896 = vrot.slane %v891, %v895
    %v897 = vlaneseq
    %v898 = vshrl.u32 %v897, 7
    %v899 = vsub.s32 0, %v898
    %v900 = vrot.slane %v892, %v899
    %v901 = vmul.f32 %v857, %v896
    %v902 = vmul.f32 %v858, %v900
    %v903 = vld [vmem:[%s4] sm:$0x3]
    %v905 = vlaneseq
    %v906 = vshrl.u32 %v905, 7
    %v907 = vsub.s32 0, %v906
    %v908 = vrot.slane %v903, %v907
    %v909 = vlaneseq
    %v910 = vshrl.u32 %v909, 7
    %v911 = vsub.s32 1, %v910
    %v912 = vrot.slane %v903, %v911
    %v915 = vadd.f32 %v901, %v908
    %v916 = vadd.f32 %v902, %v912
    %v917 = vpack.c.bf16 %v915, %v915
    %v918 = vpack.c.bf16 %v916, %v916
    %v919 = vld [vmem:[#allocation9] sm:$0xff]
    %v920 = vld [vmem:[#allocation9 + $0x8] sm:$0xff]
    %v921 = vld [vmem:[#allocation9 + $0x10] sm:$0xff]
    %v922 = vld [vmem:[#allocation9 + $0x18] sm:$0xff]
    %v923 = vld [vmem:[#allocation9 + $0x20] sm:$0xff]
    %v924 = vld [vmem:[#allocation9 + $0x28] sm:$0xff]
    %v925 = vld [vmem:[#allocation9 + $0x30] sm:$0xff]
    %v926 = vld [vmem:[#allocation9 + $0x38] sm:$0xff]
    %v927 = vld [vmem:[#allocation9 + $0x40] sm:$0xff]
    %v928 = vld [vmem:[#allocation9 + $0x48] sm:$0xff]
    %v929 = vld [vmem:[#allocation9 + $0x50] sm:$0xff]
    %v930 = vld [vmem:[#allocation9 + $0x58] sm:$0xff]
    %v931 = vld [vmem:[#allocation9 + $0x60] sm:$0xff]
    %v932 = vld [vmem:[#allocation9 + $0x68] sm:$0xff]
    %v933 = vld [vmem:[#allocation9 + $0x70] sm:$0xff]
    %v934 = vld [vmem:[#allocation9 + $0x78] sm:$0xff]
    %v935 = vld [vmem:[#allocation9 + $0x80] sm:$0xff]
    %v936 = vld [vmem:[#allocation9 + $0x88] sm:$0xff]
    %v937 = vld [vmem:[#allocation9 + $0x90] sm:$0xff]
    %v938 = vld [vmem:[#allocation9 + $0x98] sm:$0xff]
    %v939 = vld [vmem:[#allocation9 + $0xa0] sm:$0xff]
    %v940 = vld [vmem:[#allocation9 + $0xa8] sm:$0xff]
    %v941 = vld [vmem:[#allocation9 + $0xb0] sm:$0xff]
    %v942 = vld [vmem:[#allocation9 + $0xb8] sm:$0xff]
    %v943 = vld [vmem:[#allocation9 + $0xc0] sm:$0xff]
    %v944 = vld [vmem:[#allocation9 + $0xc8] sm:$0xff]
    %v945 = vld [vmem:[#allocation9 + $0xd0] sm:$0xff]
    %v946 = vld [vmem:[#allocation9 + $0xd8] sm:$0xff]
    %v947 = vld [vmem:[#allocation9 + $0xe0] sm:$0xff]
    %v948 = vld [vmem:[#allocation9 + $0xe8] sm:$0xff]
    %v949 = vld [vmem:[#allocation9 + $0xf0] sm:$0xff]
    %v950 = vld [vmem:[#allocation9 + $0xf8] sm:$0xff]
    %v951 = vld [vmem:[#allocation9 + $0x100] sm:$0xff]
    %v952 = vld [vmem:[#allocation9 + $0x108] sm:$0xff]
    %v953 = vld [vmem:[#allocation9 + $0x110] sm:$0xff]
    %v954 = vld [vmem:[#allocation9 + $0x118] sm:$0xff]
    %v955 = vld [vmem:[#allocation9 + $0x120] sm:$0xff]
    %v956 = vld [vmem:[#allocation9 + $0x128] sm:$0xff]
    %v957 = vld [vmem:[#allocation9 + $0x130] sm:$0xff]
    %v958 = vld [vmem:[#allocation9 + $0x138] sm:$0xff]
    %v959 = vld [vmem:[#allocation9 + $0x140] sm:$0xff]
    %v960 = vld [vmem:[#allocation9 + $0x148] sm:$0xff]
    %v961 = vld [vmem:[#allocation9 + $0x150] sm:$0xff]
    %v962 = vld [vmem:[#allocation9 + $0x158] sm:$0xff]
    %v963 = vld [vmem:[#allocation9 + $0x160] sm:$0xff]
    %v964 = vld [vmem:[#allocation9 + $0x168] sm:$0xff]
    %v965 = vld [vmem:[#allocation9 + $0x170] sm:$0xff]
    %v966 = vld [vmem:[#allocation9 + $0x178] sm:$0xff]
    %v967 = vld [vmem:[#allocation9 + $0x180] sm:$0xff]
    %v968 = vld [vmem:[#allocation9 + $0x188] sm:$0xff]
    %v969 = vld [vmem:[#allocation9 + $0x190] sm:$0xff]
    %v970 = vld [vmem:[#allocation9 + $0x198] sm:$0xff]
    %v971 = vld [vmem:[#allocation9 + $0x1a0] sm:$0xff]
    %v972 = vld [vmem:[#allocation9 + $0x1a8] sm:$0xff]
    %v973 = vld [vmem:[#allocation9 + $0x1b0] sm:$0xff]
    %v974 = vld [vmem:[#allocation9 + $0x1b8] sm:$0xff]
    %v975 = vld [vmem:[#allocation9 + $0x1c0] sm:$0xff]
    %v976 = vld [vmem:[#allocation9 + $0x1c8] sm:$0xff]
    %v977 = vld [vmem:[#allocation9 + $0x1d0] sm:$0xff]
    %v978 = vld [vmem:[#allocation9 + $0x1d8] sm:$0xff]
    %v979 = vld [vmem:[#allocation9 + $0x1e0] sm:$0xff]
    %v980 = vld [vmem:[#allocation9 + $0x1e8] sm:$0xff]
    %v981 = vld [vmem:[#allocation9 + $0x1f0] sm:$0xff]
    %v982 = vld [vmem:[#allocation9 + $0x1f8] sm:$0xff]
    %v1047 = vunpack.c.l.b16 %v919
    %v1048 = vunpack.c.h.b16 %v919
    %v1049 = vunpack.c.l.b16 %v920
    %v1050 = vunpack.c.h.b16 %v920
    %v1051 = vunpack.c.l.b16 %v921
    %v1052 = vunpack.c.h.b16 %v921
    %v1053 = vunpack.c.l.b16 %v922
    %v1054 = vunpack.c.h.b16 %v922
    %v1055 = vunpack.c.l.b16 %v923
    %v1056 = vunpack.c.h.b16 %v923
    %v1057 = vunpack.c.l.b16 %v924
    %v1058 = vunpack.c.h.b16 %v924
    %v1059 = vunpack.c.l.b16 %v925
    %v1060 = vunpack.c.h.b16 %v925
    %v1061 = vunpack.c.l.b16 %v926
    %v1062 = vunpack.c.h.b16 %v926
    %v1063 = vunpack.c.l.b16 %v927
    %v1064 = vunpack.c.h.b16 %v927
    %v1065 = vunpack.c.l.b16 %v928
    %v1066 = vunpack.c.h.b16 %v928
    %v1067 = vunpack.c.l.b16 %v929
    %v1068 = vunpack.c.h.b16 %v929
    %v1069 = vunpack.c.l.b16 %v930
    %v1070 = vunpack.c.h.b16 %v930
    %v1071 = vunpack.c.l.b16 %v931
    %v1072 = vunpack.c.h.b16 %v931
    %v1073 = vunpack.c.l.b16 %v932
    %v1074 = vunpack.c.h.b16 %v932
    %v1075 = vunpack.c.l.b16 %v933
    %v1076 = vunpack.c.h.b16 %v933
    %v1077 = vunpack.c.l.b16 %v934
    %v1078 = vunpack.c.h.b16 %v934
    %v1079 = vunpack.c.l.b16 %v935
    %v1080 = vunpack.c.h.b16 %v935
    %v1081 = vunpack.c.l.b16 %v936
    %v1082 = vunpack.c.h.b16 %v936
    %v1083 = vunpack.c.l.b16 %v937
    %v1084 = vunpack.c.h.b16 %v937
    %v1085 = vunpack.c.l.b16 %v938
    %v1086 = vunpack.c.h.b16 %v938
    %v1087 = vunpack.c.l.b16 %v939
    %v1088 = vunpack.c.h.b16 %v939
    %v1089 = vunpack.c.l.b16 %v940
    %v1090 = vunpack.c.h.b16 %v940
    %v1091 = vunpack.c.l.b16 %v941
    %v1092 = vunpack.c.h.b16 %v941
    %v1093 = vunpack.c.l.b16 %v942
    %v1094 = vunpack.c.h.b16 %v942
    %v1095 = vunpack.c.l.b16 %v943
    %v1096 = vunpack.c.h.b16 %v943
    %v1097 = vunpack.c.l.b16 %v944
    %v1098 = vunpack.c.h.b16 %v944
    %v1099 = vunpack.c.l.b16 %v945
    %v1100 = vunpack.c.h.b16 %v945
    %v1101 = vunpack.c.l.b16 %v946
    %v1102 = vunpack.c.h.b16 %v946
    %v1103 = vunpack.c.l.b16 %v947
    %v1104 = vunpack.c.h.b16 %v947
    %v1105 = vunpack.c.l.b16 %v948
    %v1106 = vunpack.c.h.b16 %v948
    %v1107 = vunpack.c.l.b16 %v949
    %v1108 = vunpack.c.h.b16 %v949
    %v1109 = vunpack.c.l.b16 %v950
    %v1110 = vunpack.c.h.b16 %v950
    %v1111 = vunpack.c.l.b16 %v951
    %v1112 = vunpack.c.h.b16 %v951
    %v1113 = vunpack.c.l.b16 %v952
    %v1114 = vunpack.c.h.b16 %v952
    %v1115 = vunpack.c.l.b16 %v953
    %v1116 = vunpack.c.h.b16 %v953
    %v1117 = vunpack.c.l.b16 %v954
    %v1118 = vunpack.c.h.b16 %v954
    %v1119 = vunpack.c.l.b16 %v955
    %v1120 = vunpack.c.h.b16 %v955
    %v1121 = vunpack.c.l.b16 %v956
    %v1122 = vunpack.c.h.b16 %v956
    %v1123 = vunpack.c.l.b16 %v957
    %v1124 = vunpack.c.h.b16 %v957
    %v1125 = vunpack.c.l.b16 %v958
    %v1126 = vunpack.c.h.b16 %v958
    %v1127 = vunpack.c.l.b16 %v959
    %v1128 = vunpack.c.h.b16 %v959
    %v1129 = vunpack.c.l.b16 %v960
    %v1130 = vunpack.c.h.b16 %v960
    %v1131 = vunpack.c.l.b16 %v961
    %v1132 = vunpack.c.h.b16 %v961
    %v1133 = vunpack.c.l.b16 %v962
    %v1134 = vunpack.c.h.b16 %v962
    %v1135 = vunpack.c.l.b16 %v963
    %v1136 = vunpack.c.h.b16 %v963
    %v1137 = vunpack.c.l.b16 %v964
    %v1138 = vunpack.c.h.b16 %v964
    %v1139 = vunpack.c.l.b16 %v965
    %v1140 = vunpack.c.h.b16 %v965
    %v1141 = vunpack.c.l.b16 %v966
    %v1142 = vunpack.c.h.b16 %v966
    %v1143 = vunpack.c.l.b16 %v967
    %v1144 = vunpack.c.h.b16 %v967
    %v1145 = vunpack.c.l.b16 %v968
    %v1146 = vunpack.c.h.b16 %v968
    %v1147 = vunpack.c.l.b16 %v969
    %v1148 = vunpack.c.h.b16 %v969
    %v1149 = vunpack.c.l.b16 %v970
    %v1150 = vunpack.c.h.b16 %v970
    %v1151 = vunpack.c.l.b16 %v971
    %v1152 = vunpack.c.h.b16 %v971
    %v1153 = vunpack.c.l.b16 %v972
    %v1154 = vunpack.c.h.b16 %v972
    %v1155 = vunpack.c.l.b16 %v973
    %v1156 = vunpack.c.h.b16 %v973
    %v1157 = vunpack.c.l.b16 %v974
    %v1158 = vunpack.c.h.b16 %v974
    %v1159 = vunpack.c.l.b16 %v975
    %v1160 = vunpack.c.h.b16 %v975
    %v1161 = vunpack.c.l.b16 %v976
    %v1162 = vunpack.c.h.b16 %v976
    %v1163 = vunpack.c.l.b16 %v977
    %v1164 = vunpack.c.h.b16 %v977
    %v1165 = vunpack.c.l.b16 %v978
    %v1166 = vunpack.c.h.b16 %v978
    %v1167 = vunpack.c.l.b16 %v979
    %v1168 = vunpack.c.h.b16 %v979
    %v1169 = vunpack.c.l.b16 %v980
    %v1170 = vunpack.c.h.b16 %v980
    %v1171 = vunpack.c.l.b16 %v981
    %v1172 = vunpack.c.h.b16 %v981
    %v1173 = vunpack.c.l.b16 %v982
    %v1174 = vunpack.c.h.b16 %v982
    %v1175 = vpack.c.b16 %v1051, %v1047
    %v1176 = vpack.c.b16 %v1052, %v1048
    %v1177 = vpack.c.b16 %v1053, %v1049
    %v1178 = vpack.c.b16 %v1054, %v1050
    %v1179 = vpack.c.b16 %v1059, %v1055
    %v1180 = vpack.c.b16 %v1060, %v1056
    %v1181 = vpack.c.b16 %v1061, %v1057
    %v1182 = vpack.c.b16 %v1062, %v1058
    %v1183 = vpack.c.b16 %v1067, %v1063
    %v1184 = vpack.c.b16 %v1068, %v1064
    %v1185 = vpack.c.b16 %v1069, %v1065
    %v1186 = vpack.c.b16 %v1070, %v1066
    %v1187 = vpack.c.b16 %v1075, %v1071
    %v1188 = vpack.c.b16 %v1076, %v1072
    %v1189 = vpack.c.b16 %v1077, %v1073
    %v1190 = vpack.c.b16 %v1078, %v1074
    %v1191 = vpack.c.b16 %v1083, %v1079
    %v1192 = vpack.c.b16 %v1084, %v1080
    %v1193 = vpack.c.b16 %v1085, %v1081
    %v1194 = vpack.c.b16 %v1086, %v1082
    %v1195 = vpack.c.b16 %v1091, %v1087
    %v1196 = vpack.c.b16 %v1092, %v1088
    %v1197 = vpack.c.b16 %v1093, %v1089
    %v1198 = vpack.c.b16 %v1094, %v1090
    %v1199 = vpack.c.b16 %v1099, %v1095
    %v1200 = vpack.c.b16 %v1100, %v1096
    %v1201 = vpack.c.b16 %v1101, %v1097
    %v1202 = vpack.c.b16 %v1102, %v1098
    %v1203 = vpack.c.b16 %v1107, %v1103
    %v1204 = vpack.c.b16 %v1108, %v1104
    %v1205 = vpack.c.b16 %v1109, %v1105
    %v1206 = vpack.c.b16 %v1110, %v1106
    %v1207 = vpack.c.b16 %v1115, %v1111
    %v1208 = vpack.c.b16 %v1116, %v1112
    %v1209 = vpack.c.b16 %v1117, %v1113
    %v1210 = vpack.c.b16 %v1118, %v1114
    %v1211 = vpack.c.b16 %v1123, %v1119
    %v1212 = vpack.c.b16 %v1124, %v1120
    %v1213 = vpack.c.b16 %v1125, %v1121
    %v1214 = vpack.c.b16 %v1126, %v1122
    %v1215 = vpack.c.b16 %v1131, %v1127
    %v1216 = vpack.c.b16 %v1132, %v1128
    %v1217 = vpack.c.b16 %v1133, %v1129
    %v1218 = vpack.c.b16 %v1134, %v1130
    %v1219 = vpack.c.b16 %v1139, %v1135
    %v1220 = vpack.c.b16 %v1140, %v1136
    %v1221 = vpack.c.b16 %v1141, %v1137
    %v1222 = vpack.c.b16 %v1142, %v1138
    %v1223 = vpack.c.b16 %v1147, %v1143
    %v1224 = vpack.c.b16 %v1148, %v1144
    %v1225 = vpack.c.b16 %v1149, %v1145
    %v1226 = vpack.c.b16 %v1150, %v1146
    %v1227 = vpack.c.b16 %v1155, %v1151
    %v1228 = vpack.c.b16 %v1156, %v1152
    %v1229 = vpack.c.b16 %v1157, %v1153
    %v1230 = vpack.c.b16 %v1158, %v1154
    %v1231 = vpack.c.b16 %v1163, %v1159
    %v1232 = vpack.c.b16 %v1164, %v1160
    %v1233 = vpack.c.b16 %v1165, %v1161
    %v1234 = vpack.c.b16 %v1166, %v1162
    %v1235 = vpack.c.b16 %v1171, %v1167
    %v1236 = vpack.c.b16 %v1172, %v1168
    %v1237 = vpack.c.b16 %v1173, %v1169
    %v1238 = vpack.c.b16 %v1174, %v1170
    %1303 = vmatprep.subr.bf16.mxu0 %v1204
    %1304 = vmatpush1.bf16.msra.mxu0 %v1203
    %1305 = vmatprep.subr.bf16.mxu0 %v1200
    %1306 = vmatpush1.bf16.msra.mxu0 %v1199
    %1307 = vmatprep.subr.bf16.mxu0 %v1196
    %1308 = vmatpush1.bf16.msra.mxu0 %v1195
    %1309 = vmatprep.subr.bf16.mxu0 %v1192
    %1310 = vmatpush1.bf16.msra.mxu0 %v1191
    %1311 = vmatprep.subr.bf16.mxu0 %v1188
    %1312 = vmatpush1.bf16.msra.mxu0 %v1187
    %1313 = vmatprep.subr.bf16.mxu0 %v1184
    %1314 = vmatpush1.bf16.msra.mxu0 %v1183
    %1315 = vmatprep.subr.bf16.mxu0 %v1180
    %1316 = vmatpush1.bf16.msra.mxu0 %v1179
    %1317 = vmatprep.subr.bf16.mxu0 %v1176
    %1318 = vmatpush1.bf16.msra.mxu0 %v1175
    %1319 = vmatprep.subr.bf16.mxu0 %v1236
    %1320 = vmatpush2.bf16.msra.mxu0 %v1235
    %1321 = vmatprep.subr.bf16.mxu0 %v1232
    %1322 = vmatpush2.bf16.msra.mxu0 %v1231
    %1323 = vmatprep.subr.bf16.mxu0 %v1228
    %1324 = vmatpush2.bf16.msra.mxu0 %v1227
    %1325 = vmatprep.subr.bf16.mxu0 %v1224
    %1326 = vmatpush2.bf16.msra.mxu0 %v1223
    %1327 = vmatprep.subr.bf16.mxu0 %v1220
    %1328 = vmatpush2.bf16.msra.mxu0 %v1219
    %1329 = vmatprep.subr.bf16.mxu0 %v1216
    %1330 = vmatpush2.bf16.msra.mxu0 %v1215
    %1331 = vmatprep.subr.bf16.mxu0 %v1212
    %1332 = vmatpush2.bf16.msra.mxu0 %v1211
    %1333 = vmatprep.subr.bf16.mxu0 %v1208
    %1334 = vmatpush2.bf16.msra.mxu0 %v1207
    %1335 = vmatprep.mubr.bf16.mxu0 %v918
    %1336 = vmatmul.mubr.bf16.gmra.mxu0 %v917
    %v1337 = vpop.f32.mrf.mxu0
    %v1338 = vadd.f32 0.0, %v1337
    %v1339 = vpop.f32.mrf.mxu0
    %v1340 = vadd.f32 0.0, %v1339
    %v1341 = vpop.f32.mrf.mxu0
    %v1342 = vpop.f32.mrf.mxu0
    %1343 = vdwg.mxu0
    %1344 = vmatprep.subr.bf16.mxu0 %v1206
    %1345 = vmatpush1.bf16.msra.mxu0 %v1205
    %1346 = vmatprep.subr.bf16.mxu0 %v1202
    %1347 = vmatpush1.bf16.msra.mxu0 %v1201
    %1348 = vmatprep.subr.bf16.mxu0 %v1198
    %1349 = vmatpush1.bf16.msra.mxu0 %v1197
    %1350 = vmatprep.subr.bf16.mxu0 %v1194
    %1351 = vmatpush1.bf16.msra.mxu0 %v1193
    %1352 = vmatprep.subr.bf16.mxu0 %v1190
    %1353 = vmatpush1.bf16.msra.mxu0 %v1189
    %1354 = vmatprep.subr.bf16.mxu0 %v1186
    %1355 = vmatpush1.bf16.msra.mxu0 %v1185
    %1356 = vmatprep.subr.bf16.mxu0 %v1182
    %1357 = vmatpush1.bf16.msra.mxu0 %v1181
    %1358 = vmatprep.subr.bf16.mxu0 %v1178
    %1359 = vmatpush1.bf16.msra.mxu0 %v1177
    %1360 = vmatprep.subr.bf16.mxu0 %v1238
    %1361 = vmatpush2.bf16.msra.mxu0 %v1237
    %1362 = vmatprep.subr.bf16.mxu0 %v1234
    %1363 = vmatpush2.bf16.msra.mxu0 %v1233
    %1364 = vmatprep.subr.bf16.mxu0 %v1230
    %1365 = vmatpush2.bf16.msra.mxu0 %v1229
    %1366 = vmatprep.subr.bf16.mxu0 %v1226
    %1367 = vmatpush2.bf16.msra.mxu0 %v1225
    %1368 = vmatprep.subr.bf16.mxu0 %v1222
    %1369 = vmatpush2.bf16.msra.mxu0 %v1221
    %1370 = vmatprep.subr.bf16.mxu0 %v1218
    %1371 = vmatpush2.bf16.msra.mxu0 %v1217
    %1372 = vmatprep.subr.bf16.mxu0 %v1214
    %1373 = vmatpush2.bf16.msra.mxu0 %v1213
    %1374 = vmatprep.subr.bf16.mxu0 %v1210
    %1375 = vmatpush2.bf16.msra.mxu0 %v1209
    %1376 = vmatprep.mubr.bf16.mxu0 %v918
    %1377 = vmatmul.mubr.bf16.gmra.mxu0 %v917
    %v1378 = vpop.f32.mrf.mxu0
    %v1379 = vadd.f32 0.0, %v1378
    %v1380 = vpop.f32.mrf.mxu0
    %v1381 = vadd.f32 0.0, %v1380
    %v1382 = vpop.f32.mrf.mxu0
    %v1383 = vpop.f32.mrf.mxu0
    %1384 = vdwg.mxu0
    %v1385 = vld [vmem:[#allocation7] sm:$0xf]
    %v1386 = vld [vmem:[#allocation7 + $0x4] sm:$0xf]
    %v1387 = vpack.c.bf16 %v1340, %v1338
    %v1388 = vpack.c.bf16 %v1381, %v1379
    %v1391 = vunpack.c.l.b16 %v1385
    %v1392 = vunpack.c.l.b16 %v1386
    %v1393 = vpack.c.b16 %v1392, %v1391
    %v1395 = vsel %vm798, %v1393, 0
    %1397 = vmatprep.subr.bf16.mxu0 0
    %1398 = vmatpush1.bf16.msra.mxu0 0
    %1399 = vmatprep.subr.bf16.mxu0 0
    %1400 = vmatpush1.bf16.msra.mxu0 0
    %1401 = vmatprep.subr.bf16.mxu0 0
    %1402 = vmatpush1.bf16.msra.mxu0 0
    %1403 = vmatprep.subr.bf16.mxu0 0
    %1404 = vmatpush1.bf16.msra.mxu0 0
    %1405 = vmatprep.subr.bf16.mxu0 0
    %1406 = vmatpush1.bf16.msra.mxu0 0
    %1407 = vmatprep.subr.bf16.mxu0 0
    %1408 = vmatpush1.bf16.msra.mxu0 0
    %1409 = vmatprep.subr.bf16.mxu0 0
    %1410 = vmatpush1.bf16.msra.mxu0 %v1388
    %1411 = vmatprep.subr.bf16.mxu0 0
    %1412 = vmatpush1.bf16.msra.mxu0 %v1387
    %1413 = vmatprep.subr.bf16.mxu0 0
    %1414 = vmatpush2.bf16.msra.mxu0 0
    %1415 = vmatprep.subr.bf16.mxu0 0
    %1416 = vmatpush2.bf16.msra.mxu0 0
    %1417 = vmatprep.subr.bf16.mxu0 0
    %1418 = vmatpush2.bf16.msra.mxu0 0
    %1419 = vmatprep.subr.bf16.mxu0 0
    %1420 = vmatpush2.bf16.msra.mxu0 0
    %1421 = vmatprep.subr.bf16.mxu0 0
    %1422 = vmatpush2.bf16.msra.mxu0 0
    %1423 = vmatprep.subr.bf16.mxu0 0
    %1424 = vmatpush2.bf16.msra.mxu0 0
    %1425 = vmatprep.subr.bf16.mxu0 0
    %1426 = vmatpush2.bf16.msra.mxu0 0
    %1427 = vmatprep.subr.bf16.mxu0 0
    %1428 = vmatpush2.bf16.msra.mxu0 0
    %1429 = vmatprep.mubr.bf16.mxu0 0
    %1430 = vmatmul.mubr.bf16.gmra.mxu0 %v1395
    %v1431 = vpop.f32.mrf.mxu0
    %v1432 = vadd.f32 0.0, %v1431
    %v1433 = vpop.f32.mrf.mxu0
    %v1434 = vpop.f32.mrf.mxu0
    %v1435 = vadd.f32 0.0, %v1434
    %v1436 = vpop.f32.mrf.mxu0
    %1437 = vdwg.mxu0
    %v1438 = vadd.f32 %v1432, %v1435
    %v1439 = vrot.slane %v1438, 4
    %v1440 = vadd.f32 %v1438, %v1439
    %v1441 = vrot.slane %v1440, 2
    %v1442 = vadd.f32 %v1440, %v1441
    %v1443 = vrot.slane %v1442, 1
    %v1444 = vadd.f32 %v1442, %v1443
    %v1445 = vmul.f32 %v1444, 0.0625
    %v1446 = vsub.f32 %v1432, %v1445
    %v1447 = vsub.f32 %v1435, %v1445
    %v1448 = vmul.f32 %v1446, %v1446
    %v1449 = vmul.f32 %v1447, %v1447
    %v1450 = vadd.f32 %v1448, %v1449
    %v1451 = vrot.slane %v1450, 4
    %v1452 = vadd.f32 %v1450, %v1451
    %v1453 = vrot.slane %v1452, 2
    %v1454 = vadd.f32 %v1452, %v1453
    %v1455 = vrot.slane %v1454, 1
    %v1456 = vadd.f32 %v1454, %v1455
    %v1457 = vmul.f32 %v1456, 0.0625
    %v1458 = vadd.f32 %v1457, 1e-05
    %v1459 = vrsqrt.pop %v1458
    %v1460 = vld [vmem:[#allocation10] sm:$0x1]
    %v1461 = vmul.f32 %v1459, %v1460
    %v1462 = vlaneseq
    %v1463 = vshrl.u32 %v1462, 7
    %v1464 = vsub.s32 0, %v1463
    %v1465 = vrot.slane %v1461, %v1464
    %v1466 = vmul.f32 %v1446, %v1465
    %v1467 = vmul.f32 %v1447, %v1465
    %v1468 = vld [vmem:[#allocation12] sm:$0x1]
    %v1470 = vlaneseq
    %v1471 = vshrl.u32 %v1470, 7
    %v1472 = vsub.s32 0, %v1471
    %v1473 = vrot.slane %v1468, %v1472
    %v1475 = vadd.f32 %v1466, %v1473
    %v1476 = vadd.f32 %v1467, %v1473
    %v1477 = vmax.f32 %v1475, 0.0
    %v1478 = vmax.f32 %v1476, 0.0
    %v1479 = vpack.c.bf16 %v1478, %v1477
    %v1480 = vld [vmem:[#allocation15] sm:$0xff]
    %v1481 = vld [vmem:[#allocation15 + $0x8] sm:$0xff]
    %v1482 = vld [vmem:[#allocation15 + $0x10] sm:$0xff]
    %v1483 = vld [vmem:[#allocation15 + $0x18] sm:$0xff]
    %v1484 = vld [vmem:[#allocation15 + $0x20] sm:$0xff]
    %v1485 = vld [vmem:[#allocation15 + $0x28] sm:$0xff]
    %v1486 = vld [vmem:[#allocation15 + $0x30] sm:$0xff]
    %v1487 = vld [vmem:[#allocation15 + $0x38] sm:$0xff]
    %v1488 = vld [vmem:[#allocation15 + $0x40] sm:$0xff]
    %v1489 = vld [vmem:[#allocation15 + $0x48] sm:$0xff]
    %v1490 = vld [vmem:[#allocation15 + $0x50] sm:$0xff]
    %v1491 = vld [vmem:[#allocation15 + $0x58] sm:$0xff]
    %v1492 = vld [vmem:[#allocation15 + $0x60] sm:$0xff]
    %v1493 = vld [vmem:[#allocation15 + $0x68] sm:$0xff]
    %v1494 = vld [vmem:[#allocation15 + $0x70] sm:$0xff]
    %v1495 = vld [vmem:[#allocation15 + $0x78] sm:$0xff]
    %v1496 = vld [vmem:[#allocation15 + $0x80] sm:$0xff]
    %v1497 = vld [vmem:[#allocation15 + $0x88] sm:$0xff]
    %v1498 = vld [vmem:[#allocation15 + $0x90] sm:$0xff]
    %v1499 = vld [vmem:[#allocation15 + $0x98] sm:$0xff]
    %v1500 = vld [vmem:[#allocation15 + $0xa0] sm:$0xff]
    %v1501 = vld [vmem:[#allocation15 + $0xa8] sm:$0xff]
    %v1502 = vld [vmem:[#allocation15 + $0xb0] sm:$0xff]
    %v1503 = vld [vmem:[#allocation15 + $0xb8] sm:$0xff]
    %v1504 = vld [vmem:[#allocation15 + $0xc0] sm:$0xff]
    %v1505 = vld [vmem:[#allocation15 + $0xc8] sm:$0xff]
    %v1506 = vld [vmem:[#allocation15 + $0xd0] sm:$0xff]
    %v1507 = vld [vmem:[#allocation15 + $0xd8] sm:$0xff]
    %v1508 = vld [vmem:[#allocation15 + $0xe0] sm:$0xff]
    %v1509 = vld [vmem:[#allocation15 + $0xe8] sm:$0xff]
    %v1510 = vld [vmem:[#allocation15 + $0xf0] sm:$0xff]
    %v1511 = vld [vmem:[#allocation15 + $0xf8] sm:$0xff]
    %v1544 = vunpack.c.l.b16 %v1480
    %v1545 = vunpack.c.h.b16 %v1480
    %v1546 = vunpack.c.l.b16 %v1481
    %v1547 = vunpack.c.h.b16 %v1481
    %v1548 = vunpack.c.l.b16 %v1482
    %v1549 = vunpack.c.h.b16 %v1482
    %v1550 = vunpack.c.l.b16 %v1483
    %v1551 = vunpack.c.h.b16 %v1483
    %v1552 = vunpack.c.l.b16 %v1484
    %v1553 = vunpack.c.h.b16 %v1484
    %v1554 = vunpack.c.l.b16 %v1485
    %v1555 = vunpack.c.h.b16 %v1485
    %v1556 = vunpack.c.l.b16 %v1486
    %v1557 = vunpack.c.h.b16 %v1486
    %v1558 = vunpack.c.l.b16 %v1487
    %v1559 = vunpack.c.h.b16 %v1487
    %v1560 = vunpack.c.l.b16 %v1488
    %v1561 = vunpack.c.h.b16 %v1488
    %v1562 = vunpack.c.l.b16 %v1489
    %v1563 = vunpack.c.h.b16 %v1489
    %v1564 = vunpack.c.l.b16 %v1490
    %v1565 = vunpack.c.h.b16 %v1490
    %v1566 = vunpack.c.l.b16 %v1491
    %v1567 = vunpack.c.h.b16 %v1491
    %v1568 = vunpack.c.l.b16 %v1492
    %v1569 = vunpack.c.h.b16 %v1492
    %v1570 = vunpack.c.l.b16 %v1493
    %v1571 = vunpack.c.h.b16 %v1493
    %v1572 = vunpack.c.l.b16 %v1494
    %v1573 = vunpack.c.h.b16 %v1494
    %v1574 = vunpack.c.l.b16 %v1495
    %v1575 = vunpack.c.h.b16 %v1495
    %v1576 = vunpack.c.l.b16 %v1496
    %v1577 = vunpack.c.h.b16 %v1496
    %v1578 = vunpack.c.l.b16 %v1497
    %v1579 = vunpack.c.h.b16 %v1497
    %v1580 = vunpack.c.l.b16 %v1498
    %v1581 = vunpack.c.h.b16 %v1498
    %v1582 = vunpack.c.l.b16 %v1499
    %v1583 = vunpack.c.h.b16 %v1499
    %v1584 = vunpack.c.l.b16 %v1500
    %v1585 = vunpack.c.h.b16 %v1500
    %v1586 = vunpack.c.l.b16 %v1501
    %v1587 = vunpack.c.h.b16 %v1501
    %v1588 = vunpack.c.l.b16 %v1502
    %v1589 = vunpack.c.h.b16 %v1502
    %v1590 = vunpack.c.l.b16 %v1503
    %v1591 = vunpack.c.h.b16 %v1503
    %v1592 = vunpack.c.l.b16 %v1504
    %v1593 = vunpack.c.h.b16 %v1504
    %v1594 = vunpack.c.l.b16 %v1505
    %v1595 = vunpack.c.h.b16 %v1505
    %v1596 = vunpack.c.l.b16 %v1506
    %v1597 = vunpack.c.h.b16 %v1506
    %v1598 = vunpack.c.l.b16 %v1507
    %v1599 = vunpack.c.h.b16 %v1507
    %v1600 = vunpack.c.l.b16 %v1508
    %v1601 = vunpack.c.h.b16 %v1508
    %v1602 = vunpack.c.l.b16 %v1509
    %v1603 = vunpack.c.h.b16 %v1509
    %v1604 = vunpack.c.l.b16 %v1510
    %v1605 = vunpack.c.h.b16 %v1510
    %v1606 = vunpack.c.l.b16 %v1511
    %v1607 = vunpack.c.h.b16 %v1511
    %v1608 = vpack.c.b16 %v1548, %v1544
    %v1609 = vpack.c.b16 %v1549, %v1545
    %v1610 = vpack.c.b16 %v1550, %v1546
    %v1611 = vpack.c.b16 %v1551, %v1547
    %v1612 = vpack.c.b16 %v1556, %v1552
    %v1613 = vpack.c.b16 %v1557, %v1553
    %v1614 = vpack.c.b16 %v1558, %v1554
    %v1615 = vpack.c.b16 %v1559, %v1555
    %v1616 = vpack.c.b16 %v1564, %v1560
    %v1617 = vpack.c.b16 %v1565, %v1561
    %v1618 = vpack.c.b16 %v1566, %v1562
    %v1619 = vpack.c.b16 %v1567, %v1563
    %v1620 = vpack.c.b16 %v1572, %v1568
    %v1621 = vpack.c.b16 %v1573, %v1569
    %v1622 = vpack.c.b16 %v1574, %v1570
    %v1623 = vpack.c.b16 %v1575, %v1571
    %v1624 = vpack.c.b16 %v1580, %v1576
    %v1625 = vpack.c.b16 %v1581, %v1577
    %v1626 = vpack.c.b16 %v1582, %v1578
    %v1627 = vpack.c.b16 %v1583, %v1579
    %v1628 = vpack.c.b16 %v1588, %v1584
    %v1629 = vpack.c.b16 %v1589, %v1585
    %v1630 = vpack.c.b16 %v1590, %v1586
    %v1631 = vpack.c.b16 %v1591, %v1587
    %v1632 = vpack.c.b16 %v1596, %v1592
    %v1633 = vpack.c.b16 %v1597, %v1593
    %v1634 = vpack.c.b16 %v1598, %v1594
    %v1635 = vpack.c.b16 %v1599, %v1595
    %v1636 = vpack.c.b16 %v1604, %v1600
    %v1637 = vpack.c.b16 %v1605, %v1601
    %v1638 = vpack.c.b16 %v1606, %v1602
    %v1639 = vpack.c.b16 %v1607, %v1603
    %1672 = vmatprep.subr.bf16.mxu0 %v1637
    %1673 = vmatpush1.bf16.msra.mxu0 %v1636
    %1674 = vmatprep.subr.bf16.mxu0 %v1633
    %1675 = vmatpush1.bf16.msra.mxu0 %v1632
    %1676 = vmatprep.subr.bf16.mxu0 %v1629
    %1677 = vmatpush1.bf16.msra.mxu0 %v1628
    %1678 = vmatprep.subr.bf16.mxu0 %v1625
    %1679 = vmatpush1.bf16.msra.mxu0 %v1624
    %1680 = vmatprep.subr.bf16.mxu0 %v1621
    %1681 = vmatpush1.bf16.msra.mxu0 %v1620
    %1682 = vmatprep.subr.bf16.mxu0 %v1617
    %1683 = vmatpush1.bf16.msra.mxu0 %v1616
    %1684 = vmatprep.subr.bf16.mxu0 %v1613
    %1685 = vmatpush1.bf16.msra.mxu0 %v1612
    %1686 = vmatprep.subr.bf16.mxu0 %v1609
    %1687 = vmatpush1.bf16.msra.mxu0 %v1608
    %1688 = vmatprep.subr.bf16.mxu0 0
    %1689 = vmatpush2.bf16.msra.mxu0 0
    %1690 = vmatprep.subr.bf16.mxu0 0
    %1691 = vmatpush2.bf16.msra.mxu0 0
    %1692 = vmatprep.subr.bf16.mxu0 0
    %1693 = vmatpush2.bf16.msra.mxu0 0
    %1694 = vmatprep.subr.bf16.mxu0 0
    %1695 = vmatpush2.bf16.msra.mxu0 0
    %1696 = vmatprep.subr.bf16.mxu0 0
    %1697 = vmatpush2.bf16.msra.mxu0 0
    %1698 = vmatprep.subr.bf16.mxu0 0
    %1699 = vmatpush2.bf16.msra.mxu0 0
    %1700 = vmatprep.subr.bf16.mxu0 0
    %1701 = vmatpush2.bf16.msra.mxu0 0
    %1702 = vmatprep.subr.bf16.mxu0 0
    %1703 = vmatpush2.bf16.msra.mxu0 0
    %1704 = vmatprep.mubr.bf16.mxu0 0
    %1705 = vmatmul.mubr.bf16.gmra.mxu0 %v1479
    %v1706 = vpop.f32.mrf.mxu0
    %v1707 = vadd.f32 0.0, %v1706
    %v1708 = vpop.f32.mrf.mxu0
    %v1709 = vadd.f32 0.0, %v1708
    %v1710 = vpop.f32.mrf.mxu0
    %v1711 = vadd.f32 0.0, %v1710
    %v1712 = vpop.f32.mrf.mxu0
    %v1713 = vadd.f32 0.0, %v1712
    %1714 = vdwg.mxu0
    %1715 = vmatprep.subr.bf16.mxu0 %v1639
    %1716 = vmatpush1.bf16.msra.mxu0 %v1638
    %1717 = vmatprep.subr.bf16.mxu0 %v1635
    %1718 = vmatpush1.bf16.msra.mxu0 %v1634
    %1719 = vmatprep.subr.bf16.mxu0 %v1631
    %1720 = vmatpush1.bf16.msra.mxu0 %v1630
    %1721 = vmatprep.subr.bf16.mxu0 %v1627
    %1722 = vmatpush1.bf16.msra.mxu0 %v1626
    %1723 = vmatprep.subr.bf16.mxu0 %v1623
    %1724 = vmatpush1.bf16.msra.mxu0 %v1622
    %1725 = vmatprep.subr.bf16.mxu0 %v1619
    %1726 = vmatpush1.bf16.msra.mxu0 %v1618
    %1727 = vmatprep.subr.bf16.mxu0 %v1615
    %1728 = vmatpush1.bf16.msra.mxu0 %v1614
    %1729 = vmatprep.subr.bf16.mxu0 %v1611
    %1730 = vmatpush1.bf16.msra.mxu0 %v1610
    %1731 = vmatprep.subr.bf16.mxu0 0
    %1732 = vmatpush2.bf16.msra.mxu0 0
    %1733 = vmatprep.subr.bf16.mxu0 0
    %1734 = vmatpush2.bf16.msra.mxu0 0
    %1735 = vmatprep.subr.bf16.mxu0 0
    %1736 = vmatpush2.bf16.msra.mxu0 0
    %1737 = vmatprep.subr.bf16.mxu0 0
    %1738 = vmatpush2.bf16.msra.mxu0 0
    %1739 = vmatprep.subr.bf16.mxu0 0
    %1740 = vmatpush2.bf16.msra.mxu0 0
    %1741 = vmatprep.subr.bf16.mxu0 0
    %1742 = vmatpush2.bf16.msra.mxu0 0
    %1743 = vmatprep.subr.bf16.mxu0 0
    %1744 = vmatpush2.bf16.msra.mxu0 0
    %1745 = vmatprep.subr.bf16.mxu0 0
    %1746 = vmatpush2.bf16.msra.mxu0 0
    %1747 = vmatprep.mubr.bf16.mxu0 0
    %1748 = vmatmul.mubr.bf16.gmra.mxu0 %v1479
    %v1749 = vpop.f32.mrf.mxu0
    %v1750 = vadd.f32 0.0, %v1749
    %v1751 = vpop.f32.mrf.mxu0
    %v1752 = vadd.f32 0.0, %v1751
    %v1753 = vpop.f32.mrf.mxu0
    %v1754 = vadd.f32 0.0, %v1753
    %v1755 = vpop.f32.mrf.mxu0
    %v1756 = vadd.f32 0.0, %v1755
    %1757 = vdwg.mxu0
    %v1758 = vld [vmem:[#allocation13] sm:$0xf]
    %v1759 = vld [vmem:[#allocation13 + $0x4] sm:$0xf]
    %v1760 = vld [vmem:[#allocation13 + $0x8] sm:$0xf]
    %v1761 = vld [vmem:[#allocation13 + $0xc] sm:$0xf]
    %v1762 = vpack.c.bf16 %v1711, %v1707
    %v1763 = vpack.c.bf16 %v1713, %v1709
    %v1764 = vpack.c.bf16 %v1754, %v1750
    %v1765 = vpack.c.bf16 %v1756, %v1752
    %v1770 = vunpack.c.l.b16 %v1758
    %v1771 = vunpack.c.l.b16 %v1759
    %v1772 = vunpack.c.l.b16 %v1760
    %v1773 = vunpack.c.l.b16 %v1761
    %v1774 = vpack.c.b16 %v1771, %v1770
    %v1775 = vpack.c.b16 %v1773, %v1772
    %vm1776 = vcmask 523264
    %v1778 = vsel %vm1776, %v1774, 0
    %v1781 = vsel %vm1776, %v1775, 0
    %1783 = vmatprep.subr.bf16.mxu0 0
    %1784 = vmatpush1.bf16.msra.mxu0 0
    %1785 = vmatprep.subr.bf16.mxu0 0
    %1786 = vmatpush1.bf16.msra.mxu0 0
    %1787 = vmatprep.subr.bf16.mxu0 0
    %1788 = vmatpush1.bf16.msra.mxu0 0
    %1789 = vmatprep.subr.bf16.mxu0 0
    %1790 = vmatpush1.bf16.msra.mxu0 0
    %1791 = vmatprep.subr.bf16.mxu0 0
    %1792 = vmatpush1.bf16.msra.mxu0 %v1765
    %1793 = vmatprep.subr.bf16.mxu0 0
    %1794 = vmatpush1.bf16.msra.mxu0 %v1764
    %1795 = vmatprep.subr.bf16.mxu0 0
    %1796 = vmatpush1.bf16.msra.mxu0 %v1763
    %1797 = vmatprep.subr.bf16.mxu0 0
    %1798 = vmatpush1.bf16.msra.mxu0 %v1762
    %1799 = vmatprep.subr.bf16.mxu0 0
    %1800 = vmatpush2.bf16.msra.mxu0 0
    %1801 = vmatprep.subr.bf16.mxu0 0
    %1802 = vmatpush2.bf16.msra.mxu0 0
    %1803 = vmatprep.subr.bf16.mxu0 0
    %1804 = vmatpush2.bf16.msra.mxu0 0
    %1805 = vmatprep.subr.bf16.mxu0 0
    %1806 = vmatpush2.bf16.msra.mxu0 0
    %1807 = vmatprep.subr.bf16.mxu0 0
    %1808 = vmatpush2.bf16.msra.mxu0 0
    %1809 = vmatprep.subr.bf16.mxu0 0
    %1810 = vmatpush2.bf16.msra.mxu0 0
    %1811 = vmatprep.subr.bf16.mxu0 0
    %1812 = vmatpush2.bf16.msra.mxu0 0
    %1813 = vmatprep.subr.bf16.mxu0 0
    %1814 = vmatpush2.bf16.msra.mxu0 0
    %1815 = vmatprep.mubr.bf16.mxu0 0
    %1816 = vmatmul.mubr.bf16.gmra.mxu0 %v1778
    %v1817 = vpop.f32.mrf.mxu0
    %v1818 = vadd.f32 0.0, %v1817
    %v1819 = vpop.f32.mrf.mxu0
    %v1820 = vpop.f32.mrf.mxu0
    %v1821 = vadd.f32 0.0, %v1820
    %v1822 = vpop.f32.mrf.mxu0
    %1823 = vmatprep.mubr.bf16.mxu0 0
    %1824 = vmatmul.mubr.bf16.gmra.mxu0 %v1781
    %v1825 = vpop.f32.mrf.mxu0
    %v1826 = vadd.f32 0.0, %v1825
    %v1827 = vpop.f32.mrf.mxu0
    %v1828 = vpop.f32.mrf.mxu0
    %v1829 = vadd.f32 0.0, %v1828
    %v1830 = vpop.f32.mrf.mxu0
    %1831 = vdwg.mxu0
    %v1832 = vadd.f32 %v1818, %v1821
    %v1833 = vadd.f32 %v1832, %v1826
    %v1834 = vadd.f32 %v1833, %v1829
    %v1835 = vrot.slane %v1834, 4
    %v1836 = vadd.f32 %v1834, %v1835
    %v1837 = vrot.slane %v1836, 2
    %v1838 = vadd.f32 %v1836, %v1837
    %v1839 = vrot.slane %v1838, 1
    %v1840 = vadd.f32 %v1838, %v1839
    %v1841 = vmul.f32 %v1840, 0.03125
    %v1842 = vsub.f32 %v1818, %v1841
    %v1843 = vsub.f32 %v1821, %v1841
    %v1844 = vsub.f32 %v1826, %v1841
    %v1845 = vsub.f32 %v1829, %v1841
    %v1846 = vmul.f32 %v1842, %v1842
    %v1847 = vmul.f32 %v1843, %v1843
    %v1848 = vmul.f32 %v1844, %v1844
    %v1849 = vmul.f32 %v1845, %v1845
    %v1850 = vadd.f32 %v1846, %v1847
    %v1851 = vadd.f32 %v1850, %v1848
    %v1852 = vadd.f32 %v1851, %v1849
    %v1853 = vrot.slane %v1852, 4
    %v1854 = vadd.f32 %v1852, %v1853
    %v1855 = vrot.slane %v1854, 2
    %v1856 = vadd.f32 %v1854, %v1855
    %v1857 = vrot.slane %v1856, 1
    %v1858 = vadd.f32 %v1856, %v1857
    %v1859 = vmul.f32 %v1858, 0.03125
    %v1860 = vadd.f32 %v1859, 1e-05
    %v1861 = vrsqrt.pop %v1860
    %v1862 = vld [vmem:[#allocation16] sm:$0x1]
    %v1863 = vmul.f32 %v1861, %v1862
    %v1864 = vlaneseq
    %v1865 = vshrl.u32 %v1864, 7
    %v1866 = vsub.s32 0, %v1865
    %v1867 = vrot.slane %v1863, %v1866
    %v1868 = vmul.f32 %v1842, %v1867
    %v1869 = vmul.f32 %v1843, %v1867
    %v1870 = vmul.f32 %v1844, %v1867
    %v1871 = vmul.f32 %v1845, %v1867
    %v1872 = vld [vmem:[#allocation18] sm:$0x1]
    %v1874 = vlaneseq
    %v1875 = vshrl.u32 %v1874, 7
    %v1876 = vsub.s32 0, %v1875
    %v1877 = vrot.slane %v1872, %v1876
    %v1879 = vadd.f32 %v1868, %v1877
    %v1880 = vadd.f32 %v1869, %v1877
    %v1881 = vadd.f32 %v1870, %v1877
    %v1882 = vadd.f32 %v1871, %v1877
    %v1883 = vmax.f32 %v1879, 0.0
    %v1884 = vmax.f32 %v1880, 0.0
    %v1885 = vmax.f32 %v1881, 0.0
    %v1886 = vmax.f32 %v1882, 0.0
    %v1887 = vpack.c.bf16 %v1884, %v1883
    %v1888 = vpack.c.bf16 %v1886, %v1885
    %v1889 = vld [vmem:[#allocation19] sm:$0xff]
    %v1890 = vld [vmem:[#allocation19 + $0x8] sm:$0xff]
    %v1891 = vld [vmem:[#allocation19 + $0x10] sm:$0xff]
    %v1892 = vld [vmem:[#allocation19 + $0x18] sm:$0xff]
    %v1893 = vld [vmem:[#allocation19 + $0x20] sm:$0xff]
    %v1894 = vld [vmem:[#allocation19 + $0x28] sm:$0xff]
    %v1895 = vld [vmem:[#allocation19 + $0x30] sm:$0xff]
    %v1896 = vld [vmem:[#allocation19 + $0x38] sm:$0xff]
    %v1897 = vld [vmem:[#allocation19 + $0x40] sm:$0xff]
    %v1898 = vld [vmem:[#allocation19 + $0x48] sm:$0xff]
    %v1899 = vld [vmem:[#allocation19 + $0x50] sm:$0xff]
    %v1900 = vld [vmem:[#allocation19 + $0x58] sm:$0xff]
    %v1901 = vld [vmem:[#allocation19 + $0x60] sm:$0xff]
    %v1902 = vld [vmem:[#allocation19 + $0x68] sm:$0xff]
    %v1903 = vld [vmem:[#allocation19 + $0x70] sm:$0xff]
    %v1904 = vld [vmem:[#allocation19 + $0x78] sm:$0xff]
    %v1905 = vld [vmem:[#allocation19 + $0x80] sm:$0xff]
    %v1906 = vld [vmem:[#allocation19 + $0x88] sm:$0xff]
    %v1907 = vld [vmem:[#allocation19 + $0x90] sm:$0xff]
    %v1908 = vld [vmem:[#allocation19 + $0x98] sm:$0xff]
    %v1909 = vld [vmem:[#allocation19 + $0xa0] sm:$0xff]
    %v1910 = vld [vmem:[#allocation19 + $0xa8] sm:$0xff]
    %v1911 = vld [vmem:[#allocation19 + $0xb0] sm:$0xff]
    %v1912 = vld [vmem:[#allocation19 + $0xb8] sm:$0xff]
    %v1913 = vld [vmem:[#allocation19 + $0xc0] sm:$0xff]
    %v1914 = vld [vmem:[#allocation19 + $0xc8] sm:$0xff]
    %v1915 = vld [vmem:[#allocation19 + $0xd0] sm:$0xff]
    %v1916 = vld [vmem:[#allocation19 + $0xd8] sm:$0xff]
    %v1917 = vld [vmem:[#allocation19 + $0xe0] sm:$0xff]
    %v1918 = vld [vmem:[#allocation19 + $0xe8] sm:$0xff]
    %v1919 = vld [vmem:[#allocation19 + $0xf0] sm:$0xff]
    %v1920 = vld [vmem:[#allocation19 + $0xf8] sm:$0xff]
    %v1953 = vunpack.c.l.b16 %v1889
    %v1954 = vunpack.c.h.b16 %v1889
    %v1955 = vunpack.c.l.b16 %v1890
    %v1956 = vunpack.c.h.b16 %v1890
    %v1957 = vunpack.c.l.b16 %v1891
    %v1958 = vunpack.c.h.b16 %v1891
    %v1959 = vunpack.c.l.b16 %v1892
    %v1960 = vunpack.c.h.b16 %v1892
    %v1961 = vunpack.c.l.b16 %v1893
    %v1962 = vunpack.c.h.b16 %v1893
    %v1963 = vunpack.c.l.b16 %v1894
    %v1964 = vunpack.c.h.b16 %v1894
    %v1965 = vunpack.c.l.b16 %v1895
    %v1966 = vunpack.c.h.b16 %v1895
    %v1967 = vunpack.c.l.b16 %v1896
    %v1968 = vunpack.c.h.b16 %v1896
    %v1969 = vunpack.c.l.b16 %v1897
    %v1970 = vunpack.c.h.b16 %v1897
    %v1971 = vunpack.c.l.b16 %v1898
    %v1972 = vunpack.c.h.b16 %v1898
    %v1973 = vunpack.c.l.b16 %v1899
    %v1974 = vunpack.c.h.b16 %v1899
    %v1975 = vunpack.c.l.b16 %v1900
    %v1976 = vunpack.c.h.b16 %v1900
    %v1977 = vunpack.c.l.b16 %v1901
    %v1978 = vunpack.c.h.b16 %v1901
    %v1979 = vunpack.c.l.b16 %v1902
    %v1980 = vunpack.c.h.b16 %v1902
    %v1981 = vunpack.c.l.b16 %v1903
    %v1982 = vunpack.c.h.b16 %v1903
    %v1983 = vunpack.c.l.b16 %v1904
    %v1984 = vunpack.c.h.b16 %v1904
    %v1985 = vunpack.c.l.b16 %v1905
    %v1986 = vunpack.c.h.b16 %v1905
    %v1987 = vunpack.c.l.b16 %v1906
    %v1988 = vunpack.c.h.b16 %v1906
    %v1989 = vunpack.c.l.b16 %v1907
    %v1990 = vunpack.c.h.b16 %v1907
    %v1991 = vunpack.c.l.b16 %v1908
    %v1992 = vunpack.c.h.b16 %v1908
    %v1993 = vunpack.c.l.b16 %v1909
    %v1994 = vunpack.c.h.b16 %v1909
    %v1995 = vunpack.c.l.b16 %v1910
    %v1996 = vunpack.c.h.b16 %v1910
    %v1997 = vunpack.c.l.b16 %v1911
    %v1998 = vunpack.c.h.b16 %v1911
    %v1999 = vunpack.c.l.b16 %v1912
    %v2000 = vunpack.c.h.b16 %v1912
    %v2001 = vunpack.c.l.b16 %v1913
    %v2002 = vunpack.c.h.b16 %v1913
    %v2003 = vunpack.c.l.b16 %v1914
    %v2004 = vunpack.c.h.b16 %v1914
    %v2005 = vunpack.c.l.b16 %v1915
    %v2006 = vunpack.c.h.b16 %v1915
    %v2007 = vunpack.c.l.b16 %v1916
    %v2008 = vunpack.c.h.b16 %v1916
    %v2009 = vunpack.c.l.b16 %v1917
    %v2010 = vunpack.c.h.b16 %v1917
    %v2011 = vunpack.c.l.b16 %v1918
    %v2012 = vunpack.c.h.b16 %v1918
    %v2013 = vunpack.c.l.b16 %v1919
    %v2014 = vunpack.c.h.b16 %v1919
    %v2015 = vunpack.c.l.b16 %v1920
    %v2016 = vunpack.c.h.b16 %v1920
    %v2017 = vpack.c.b16 %v1957, %v1953
    %v2018 = vpack.c.b16 %v1958, %v1954
    %v2019 = vpack.c.b16 %v1959, %v1955
    %v2020 = vpack.c.b16 %v1960, %v1956
    %v2021 = vpack.c.b16 %v1965, %v1961
    %v2022 = vpack.c.b16 %v1966, %v1962
    %v2023 = vpack.c.b16 %v1967, %v1963
    %v2024 = vpack.c.b16 %v1968, %v1964
    %v2025 = vpack.c.b16 %v1973, %v1969
    %v2026 = vpack.c.b16 %v1974, %v1970
    %v2027 = vpack.c.b16 %v1975, %v1971
    %v2028 = vpack.c.b16 %v1976, %v1972
    %v2029 = vpack.c.b16 %v1981, %v1977
    %v2030 = vpack.c.b16 %v1982, %v1978
    %v2031 = vpack.c.b16 %v1983, %v1979
    %v2032 = vpack.c.b16 %v1984, %v1980
    %v2033 = vpack.c.b16 %v1989, %v1985
    %v2034 = vpack.c.b16 %v1990, %v1986
    %v2035 = vpack.c.b16 %v1991, %v1987
    %v2036 = vpack.c.b16 %v1992, %v1988
    %v2037 = vpack.c.b16 %v1997, %v1993
    %v2038 = vpack.c.b16 %v1998, %v1994
    %v2039 = vpack.c.b16 %v1999, %v1995
    %v2040 = vpack.c.b16 %v2000, %v1996
    %v2041 = vpack.c.b16 %v2005, %v2001
    %v2042 = vpack.c.b16 %v2006, %v2002
    %v2043 = vpack.c.b16 %v2007, %v2003
    %v2044 = vpack.c.b16 %v2008, %v2004
    %v2045 = vpack.c.b16 %v2013, %v2009
    %v2046 = vpack.c.b16 %v2014, %v2010
    %v2047 = vpack.c.b16 %v2015, %v2011
    %v2048 = vpack.c.b16 %v2016, %v2012
    %2081 = vmatprep.subr.bf16.mxu0 %v2046
    %2082 = vmatpush1.bf16.msra.mxu0 %v2045
    %2083 = vmatprep.subr.bf16.mxu0 %v2042
    %2084 = vmatpush1.bf16.msra.mxu0 %v2041
    %2085 = vmatprep.subr.bf16.mxu0 %v2038
    %2086 = vmatpush1.bf16.msra.mxu0 %v2037
    %2087 = vmatprep.subr.bf16.mxu0 %v2034
    %2088 = vmatpush1.bf16.msra.mxu0 %v2033
    %2089 = vmatprep.subr.bf16.mxu0 %v2030
    %2090 = vmatpush1.bf16.msra.mxu0 %v2029
    %2091 = vmatprep.subr.bf16.mxu0 %v2026
    %2092 = vmatpush1.bf16.msra.mxu0 %v2025
    %2093 = vmatprep.subr.bf16.mxu0 %v2022
    %2094 = vmatpush1.bf16.msra.mxu0 %v2021
    %2095 = vmatprep.subr.bf16.mxu0 %v2018
    %2096 = vmatpush1.bf16.msra.mxu0 %v2017
    %2097 = vmatprep.subr.bf16.mxu0 0
    %2098 = vmatpush2.bf16.msra.mxu0 0
    %2099 = vmatprep.subr.bf16.mxu0 0
    %2100 = vmatpush2.bf16.msra.mxu0 0
    %2101 = vmatprep.subr.bf16.mxu0 0
    %2102 = vmatpush2.bf16.msra.mxu0 0
    %2103 = vmatprep.subr.bf16.mxu0 0
    %2104 = vmatpush2.bf16.msra.mxu0 0
    %2105 = vmatprep.subr.bf16.mxu0 0
    %2106 = vmatpush2.bf16.msra.mxu0 0
    %2107 = vmatprep.subr.bf16.mxu0 0
    %2108 = vmatpush2.bf16.msra.mxu0 0
    %2109 = vmatprep.subr.bf16.mxu0 0
    %2110 = vmatpush2.bf16.msra.mxu0 0
    %2111 = vmatprep.subr.bf16.mxu0 0
    %2112 = vmatpush2.bf16.msra.mxu0 0
    %2113 = vmatprep.mubr.bf16.mxu0 0
    %2114 = vmatmul.mubr.bf16.gmra.mxu0 %v1887
    %v2115 = vpop.f32.mrf.mxu0
    %v2116 = vadd.f32 0.0, %v2115
    %v2117 = vpop.f32.mrf.mxu0
    %v2118 = vadd.f32 0.0, %v2117
    %v2119 = vpop.f32.mrf.mxu0
    %v2120 = vadd.f32 0.0, %v2119
    %v2121 = vpop.f32.mrf.mxu0
    %v2122 = vadd.f32 0.0, %v2121
    %2123 = vmatprep.mubr.bf16.mxu0 0
    %2124 = vmatmul.mubr.bf16.gmra.mxu0 %v1888
    %v2125 = vpop.f32.mrf.mxu0
    %v2126 = vadd.f32 0.0, %v2125
    %v2127 = vpop.f32.mrf.mxu0
    %v2128 = vadd.f32 0.0, %v2127
    %v2129 = vpop.f32.mrf.mxu0
    %v2130 = vadd.f32 0.0, %v2129
    %v2131 = vpop.f32.mrf.mxu0
    %v2132 = vadd.f32 0.0, %v2131
    %2133 = vdwg.mxu0
    %2134 = vmatprep.subr.bf16.mxu0 %v2048
    %2135 = vmatpush1.bf16.msra.mxu0 %v2047
    %2136 = vmatprep.subr.bf16.mxu0 %v2044
    %2137 = vmatpush1.bf16.msra.mxu0 %v2043
    %2138 = vmatprep.subr.bf16.mxu0 %v2040
    %2139 = vmatpush1.bf16.msra.mxu0 %v2039
    %2140 = vmatprep.subr.bf16.mxu0 %v2036
    %2141 = vmatpush1.bf16.msra.mxu0 %v2035
    %2142 = vmatprep.subr.bf16.mxu0 %v2032
    %2143 = vmatpush1.bf16.msra.mxu0 %v2031
    %2144 = vmatprep.subr.bf16.mxu0 %v2028
    %2145 = vmatpush1.bf16.msra.mxu0 %v2027
    %2146 = vmatprep.subr.bf16.mxu0 %v2024
    %2147 = vmatpush1.bf16.msra.mxu0 %v2023
    %2148 = vmatprep.subr.bf16.mxu0 %v2020
    %2149 = vmatpush1.bf16.msra.mxu0 %v2019
    %2150 = vmatprep.subr.bf16.mxu0 0
    %2151 = vmatpush2.bf16.msra.mxu0 0
    %2152 = vmatprep.subr.bf16.mxu0 0
    %2153 = vmatpush2.bf16.msra.mxu0 0
    %2154 = vmatprep.subr.bf16.mxu0 0
    %2155 = vmatpush2.bf16.msra.mxu0 0
    %2156 = vmatprep.subr.bf16.mxu0 0
    %2157 = vmatpush2.bf16.msra.mxu0 0
    %2158 = vmatprep.subr.bf16.mxu0 0
    %2159 = vmatpush2.bf16.msra.mxu0 0
    %2160 = vmatprep.subr.bf16.mxu0 0
    %2161 = vmatpush2.bf16.msra.mxu0 0
    %2162 = vmatprep.subr.bf16.mxu0 0
    %2163 = vmatpush2.bf16.msra.mxu0 0
    %2164 = vmatprep.subr.bf16.mxu0 0
    %2165 = vmatpush2.bf16.msra.mxu0 0
    %2166 = vmatprep.mubr.bf16.mxu0 0
    %2167 = vmatmul.mubr.bf16.gmra.mxu0 %v1887
    %v2168 = vpop.f32.mrf.mxu0
    %v2169 = vadd.f32 0.0, %v2168
    %v2170 = vpop.f32.mrf.mxu0
    %v2171 = vadd.f32 0.0, %v2170
    %v2172 = vpop.f32.mrf.mxu0
    %v2173 = vadd.f32 0.0, %v2172
    %v2174 = vpop.f32.mrf.mxu0
    %v2175 = vadd.f32 0.0, %v2174
    %2176 = vmatprep.mubr.bf16.mxu0 0
    %2177 = vmatmul.mubr.bf16.gmra.mxu0 %v1888
    %v2178 = vpop.f32.mrf.mxu0
    %v2179 = vadd.f32 0.0, %v2178
    %v2180 = vpop.f32.mrf.mxu0
    %v2181 = vadd.f32 0.0, %v2180
    %v2182 = vpop.f32.mrf.mxu0
    %v2183 = vadd.f32 0.0, %v2182
    %v2184 = vpop.f32.mrf.mxu0
    %v2185 = vadd.f32 0.0, %v2184
    %2186 = vdwg.mxu0
    %v2187 = vld [vmem:[%s13] sm:$0xf]
    %v2188 = vld [vmem:[%s13 + $0x4] sm:$0xf]
    %v2189 = vld [vmem:[%s13 + $0x8] sm:$0xf]
    %v2190 = vld [vmem:[%s13 + $0xc] sm:$0xf]
    %v2191 = vld [vmem:[%s13 + $0x10] sm:$0xf]
    %v2192 = vld [vmem:[%s13 + $0x14] sm:$0xf]
    %v2193 = vld [vmem:[%s13 + $0x18] sm:$0xf]
    %v2194 = vld [vmem:[%s13 + $0x1c] sm:$0xf]
    %v2195 = vpack.c.bf16 %v2120, %v2116
    %v2196 = vpack.c.bf16 %v2130, %v2126
    %v2197 = vpack.c.bf16 %v2122, %v2118
    %v2198 = vpack.c.bf16 %v2132, %v2128
    %v2199 = vpack.c.bf16 %v2173, %v2169
    %v2200 = vpack.c.bf16 %v2183, %v2179
    %v2201 = vpack.c.bf16 %v2175, %v2171
    %v2202 = vpack.c.bf16 %v2185, %v2181
    %v2211 = vunpack.c.l.b16 %v2187
    %v2212 = vunpack.c.l.b16 %v2188
    %v2213 = vunpack.c.l.b16 %v2189
    %v2214 = vunpack.c.l.b16 %v2190
    %v2215 = vunpack.c.l.b16 %v2191
    %v2216 = vunpack.c.l.b16 %v2192
    %v2217 = vunpack.c.l.b16 %v2193
    %v2218 = vunpack.c.l.b16 %v2194
    %v2219 = vpack.c.b16 %v2212, %v2211
    %v2220 = vpack.c.b16 %v2214, %v2213
    %v2221 = vpack.c.b16 %v2216, %v2215
    %v2222 = vpack.c.b16 %v2218, %v2217
    %2227 = vmatprep.subr.bf16.mxu0 0
    %2228 = vmatpush1.bf16.msra.mxu0 %v2202
    %2229 = vmatprep.subr.bf16.mxu0 0
    %2230 = vmatpush1.bf16.msra.mxu0 %v2201
    %2231 = vmatprep.subr.bf16.mxu0 0
    %2232 = vmatpush1.bf16.msra.mxu0 %v2200
    %2233 = vmatprep.subr.bf16.mxu0 0
    %2234 = vmatpush1.bf16.msra.mxu0 %v2199
    %2235 = vmatprep.subr.bf16.mxu0 0
    %2236 = vmatpush1.bf16.msra.mxu0 %v2198
    %2237 = vmatprep.subr.bf16.mxu0 0
    %2238 = vmatpush1.bf16.msra.mxu0 %v2197
    %2239 = vmatprep.subr.bf16.mxu0 0
    %2240 = vmatpush1.bf16.msra.mxu0 %v2196
    %2241 = vmatprep.subr.bf16.mxu0 0
    %2242 = vmatpush1.bf16.msra.mxu0 %v2195
    %2243 = vmatprep.subr.bf16.mxu0 0
    %2244 = vmatpush2.bf16.msra.mxu0 0
    %2245 = vmatprep.subr.bf16.mxu0 0
    %2246 = vmatpush2.bf16.msra.mxu0 0
    %2247 = vmatprep.subr.bf16.mxu0 0
    %2248 = vmatpush2.bf16.msra.mxu0 0
    %2249 = vmatprep.subr.bf16.mxu0 0
    %2250 = vmatpush2.bf16.msra.mxu0 0
    %2251 = vmatprep.subr.bf16.mxu0 0
    %2252 = vmatpush2.bf16.msra.mxu0 0
    %2253 = vmatprep.subr.bf16.mxu0 0
    %2254 = vmatpush2.bf16.msra.mxu0 0
    %2255 = vmatprep.subr.bf16.mxu0 0
    %2256 = vmatpush2.bf16.msra.mxu0 0
    %2257 = vmatprep.subr.bf16.mxu0 0
    %2258 = vmatpush2.bf16.msra.mxu0 0
    %2259 = vmatprep.mubr.bf16.mxu0 0
    %2260 = vmatmul.mubr.bf16.gmra.mxu0 %v2219
    %v2261 = vpop.f32.mrf.mxu0
    %v2262 = vadd.f32 0.0, %v2261
    %v2263 = vpop.f32.mrf.mxu0
    %v2264 = vpop.f32.mrf.mxu0
    %v2265 = vadd.f32 0.0, %v2264
    %v2266 = vpop.f32.mrf.mxu0
    %2267 = vmatprep.mubr.bf16.mxu0 0
    %2268 = vmatmul.mubr.bf16.gmra.mxu0 %v2220
    %v2269 = vpop.f32.mrf.mxu0
    %v2270 = vadd.f32 0.0, %v2269
    %v2271 = vpop.f32.mrf.mxu0
    %v2272 = vpop.f32.mrf.mxu0
    %v2273 = vadd.f32 0.0, %v2272
    %v2274 = vpop.f32.mrf.mxu0
    %2275 = vmatprep.mubr.bf16.mxu0 0
    %2276 = vmatmul.mubr.bf16.gmra.mxu0 %v2221
    %v2277 = vpop.f32.mrf.mxu0
    %v2278 = vadd.f32 0.0, %v2277
    %v2279 = vpop.f32.mrf.mxu0
    %v2280 = vpop.f32.mrf.mxu0
    %v2281 = vadd.f32 0.0, %v2280
    %v2282 = vpop.f32.mrf.mxu0
    %2283 = vmatprep.mubr.bf16.mxu0 0
    %2284 = vmatmul.mubr.bf16.gmra.mxu0 %v2222
    %v2285 = vpop.f32.mrf.mxu0
    %v2286 = vadd.f32 0.0, %v2285
    %v2287 = vpop.f32.mrf.mxu0
    %v2288 = vpop.f32.mrf.mxu0
    %v2289 = vadd.f32 0.0, %v2288
    %v2290 = vpop.f32.mrf.mxu0
    %2291 = vdwg.mxu0
    %v2292 = vadd.f32 %v2262, %v2265
    %v2293 = vadd.f32 %v2292, %v2270
    %v2294 = vadd.f32 %v2293, %v2273
    %v2295 = vadd.f32 %v2294, %v2278
    %v2296 = vadd.f32 %v2295, %v2281
    %v2297 = vadd.f32 %v2296, %v2286
    %v2298 = vadd.f32 %v2297, %v2289
    %v2299 = vrot.slane %v2298, 4
    %v2300 = vadd.f32 %v2298, %v2299
    %v2301 = vrot.slane %v2300, 2
    %v2302 = vadd.f32 %v2300, %v2301
    %v2303 = vrot.slane %v2302, 1
    %v2304 = vadd.f32 %v2302, %v2303
    %v2305 = vmul.f32 %v2304, 0.015625
    %v2306 = vsub.f32 %v2262, %v2305
    %v2307 = vsub.f32 %v2265, %v2305
    %v2308 = vsub.f32 %v2270, %v2305
    %v2309 = vsub.f32 %v2273, %v2305
    %v2310 = vsub.f32 %v2278, %v2305
    %v2311 = vsub.f32 %v2281, %v2305
    %v2312 = vsub.f32 %v2286, %v2305
    %v2313 = vsub.f32 %v2289, %v2305
    %v2314 = vmul.f32 %v2306, %v2306
    %v2315 = vmul.f32 %v2307, %v2307
    %v2316 = vmul.f32 %v2308, %v2308
    %v2317 = vmul.f32 %v2309, %v2309
    %v2318 = vmul.f32 %v2310, %v2310
    %v2319 = vmul.f32 %v2311, %v2311
    %v2320 = vmul.f32 %v2312, %v2312
    %v2321 = vmul.f32 %v2313, %v2313
    %v2322 = vadd.f32 %v2314, %v2315
    %v2323 = vadd.f32 %v2322, %v2316
    %v2324 = vadd.f32 %v2323, %v2317
    %v2325 = vadd.f32 %v2324, %v2318
    %v2326 = vadd.f32 %v2325, %v2319
    %v2327 = vadd.f32 %v2326, %v2320
    %v2328 = vadd.f32 %v2327, %v2321
    %v2329 = vrot.slane %v2328, 4
    %v2330 = vadd.f32 %v2328, %v2329
    %v2331 = vrot.slane %v2330, 2
    %v2332 = vadd.f32 %v2330, %v2331
    %v2333 = vrot.slane %v2332, 1
    %v2334 = vadd.f32 %v2332, %v2333
    %v2335 = vmul.f32 %v2334, 0.015625
    %v2336 = vadd.f32 %v2335, 1e-05
    %v2337 = vrsqrt.pop %v2336
    %v2338 = vld [vmem:[%s15] sm:$0x1]
    %v2339 = vmul.f32 %v2337, %v2338
    %v2340 = vlaneseq
    %v2341 = vshrl.u32 %v2340, 7
    %v2342 = vsub.s32 0, %v2341
    %v2343 = vrot.slane %v2339, %v2342
    %v2344 = vmul.f32 %v2306, %v2343
    %v2345 = vmul.f32 %v2307, %v2343
    %v2346 = vmul.f32 %v2308, %v2343
    %v2347 = vmul.f32 %v2309, %v2343
    %v2348 = vmul.f32 %v2310, %v2343
    %v2349 = vmul.f32 %v2311, %v2343
    %v2350 = vmul.f32 %v2312, %v2343
    %v2351 = vmul.f32 %v2313, %v2343
    %v2352 = vld [vmem:[%s16] sm:$0x1]
    %v2354 = vlaneseq
    %v2355 = vshrl.u32 %v2354, 7
    %v2356 = vsub.s32 0, %v2355
    %v2357 = vrot.slane %v2352, %v2356
    %v2359 = vadd.f32 %v2344, %v2357
    %v2360 = vadd.f32 %v2345, %v2357
    %v2361 = vadd.f32 %v2346, %v2357
    %v2362 = vadd.f32 %v2347, %v2357
    %v2363 = vadd.f32 %v2348, %v2357
    %v2364 = vadd.f32 %v2349, %v2357
    %v2365 = vadd.f32 %v2350, %v2357
    %v2366 = vadd.f32 %v2351, %v2357
    %v2367 = vmax.f32 %v2359, 0.0
    %v2368 = vmax.f32 %v2360, 0.0
    %v2369 = vmax.f32 %v2361, 0.0
    %v2370 = vmax.f32 %v2362, 0.0
    %v2371 = vmax.f32 %v2363, 0.0
    %v2372 = vmax.f32 %v2364, 0.0
    %v2373 = vmax.f32 %v2365, 0.0
    %v2374 = vmax.f32 %v2366, 0.0
    %v2375 = vpack.c.bf16 %v2368, %v2367
    %v2376 = vpack.c.bf16 %v2370, %v2369
    %v2377 = vpack.c.bf16 %v2372, %v2371
    %v2378 = vpack.c.bf16 %v2374, %v2373
    %v2379 = vld [vmem:[#allocation22] sm:$0xff]
    %v2380 = vld [vmem:[#allocation22 + $0x8] sm:$0xf]
    %v2381 = vld [vmem:[#allocation22 + $0xc] sm:$0xff]
    %v2382 = vld [vmem:[#allocation22 + $0x14] sm:$0xf]
    %v2383 = vld [vmem:[#allocation22 + $0x18] sm:$0xff]
    %v2384 = vld [vmem:[#allocation22 + $0x20] sm:$0xf]
    %v2385 = vld [vmem:[#allocation22 + $0x24] sm:$0xff]
    %v2386 = vld [vmem:[#allocation22 + $0x2c] sm:$0xf]
    %v2387 = vld [vmem:[#allocation22 + $0x30] sm:$0xff]
    %v2388 = vld [vmem:[#allocation22 + $0x38] sm:$0xf]
    %v2389 = vld [vmem:[#allocation22 + $0x3c] sm:$0xff]
    %v2390 = vld [vmem:[#allocation22 + $0x44] sm:$0xf]
    %v2391 = vld [vmem:[#allocation22 + $0x48] sm:$0xff]
    %v2392 = vld [vmem:[#allocation22 + $0x50] sm:$0xf]
    %v2393 = vld [vmem:[#allocation22 + $0x54] sm:$0xff]
    %v2394 = vld [vmem:[#allocation22 + $0x5c] sm:$0xf]
    %v2395 = vld [vmem:[#allocation22 + $0x60] sm:$0xff]
    %v2396 = vld [vmem:[#allocation22 + $0x68] sm:$0xf]
    %v2397 = vld [vmem:[#allocation22 + $0x6c] sm:$0xff]
    %v2398 = vld [vmem:[#allocation22 + $0x74] sm:$0xf]
    %v2399 = vld [vmem:[#allocation22 + $0x78] sm:$0xff]
    %v2400 = vld [vmem:[#allocation22 + $0x80] sm:$0xf]
    %v2401 = vld [vmem:[#allocation22 + $0x84] sm:$0xff]
    %v2402 = vld [vmem:[#allocation22 + $0x8c] sm:$0xf]
    %v2403 = vld [vmem:[#allocation22 + $0x90] sm:$0xff]
    %v2404 = vld [vmem:[#allocation22 + $0x98] sm:$0xf]
    %v2405 = vld [vmem:[#allocation22 + $0x9c] sm:$0xff]
    %v2406 = vld [vmem:[#allocation22 + $0xa4] sm:$0xf]
    %v2407 = vld [vmem:[#allocation22 + $0xa8] sm:$0xff]
    %v2408 = vld [vmem:[#allocation22 + $0xb0] sm:$0xf]
    %v2409 = vld [vmem:[#allocation22 + $0xb4] sm:$0xff]
    %v2410 = vld [vmem:[#allocation22 + $0xbc] sm:$0xf]
    %v2443 = vunpack.c.l.b16 %v2379
    %v2444 = vunpack.c.h.b16 %v2379
    %v2445 = vunpack.c.l.b16 %v2380
    %v2446 = vunpack.c.l.b16 %v2381
    %v2447 = vunpack.c.h.b16 %v2381
    %v2448 = vunpack.c.l.b16 %v2382
    %v2449 = vunpack.c.l.b16 %v2383
    %v2450 = vunpack.c.h.b16 %v2383
    %v2451 = vunpack.c.l.b16 %v2384
    %v2452 = vunpack.c.l.b16 %v2385
    %v2453 = vunpack.c.h.b16 %v2385
    %v2454 = vunpack.c.l.b16 %v2386
    %v2455 = vunpack.c.l.b16 %v2387
    %v2456 = vunpack.c.h.b16 %v2387
    %v2457 = vunpack.c.l.b16 %v2388
    %v2458 = vunpack.c.l.b16 %v2389
    %v2459 = vunpack.c.h.b16 %v2389
    %v2460 = vunpack.c.l.b16 %v2390
    %v2461 = vunpack.c.l.b16 %v2391
    %v2462 = vunpack.c.h.b16 %v2391
    %v2463 = vunpack.c.l.b16 %v2392
    %v2464 = vunpack.c.l.b16 %v2393
    %v2465 = vunpack.c.h.b16 %v2393
    %v2466 = vunpack.c.l.b16 %v2394
    %v2467 = vunpack.c.l.b16 %v2395
    %v2468 = vunpack.c.h.b16 %v2395
    %v2469 = vunpack.c.l.b16 %v2396
    %v2470 = vunpack.c.l.b16 %v2397
    %v2471 = vunpack.c.h.b16 %v2397
    %v2472 = vunpack.c.l.b16 %v2398
    %v2473 = vunpack.c.l.b16 %v2399
    %v2474 = vunpack.c.h.b16 %v2399
    %v2475 = vunpack.c.l.b16 %v2400
    %v2476 = vunpack.c.l.b16 %v2401
    %v2477 = vunpack.c.h.b16 %v2401
    %v2478 = vunpack.c.l.b16 %v2402
    %v2479 = vunpack.c.l.b16 %v2403
    %v2480 = vunpack.c.h.b16 %v2403
    %v2481 = vunpack.c.l.b16 %v2404
    %v2482 = vunpack.c.l.b16 %v2405
    %v2483 = vunpack.c.h.b16 %v2405
    %v2484 = vunpack.c.l.b16 %v2406
    %v2485 = vunpack.c.l.b16 %v2407
    %v2486 = vunpack.c.h.b16 %v2407
    %v2487 = vunpack.c.l.b16 %v2408
    %v2488 = vunpack.c.l.b16 %v2409
    %v2489 = vunpack.c.h.b16 %v2409
    %v2490 = vunpack.c.l.b16 %v2410
    %v2491 = vpack.c.b16 %v2446, %v2443
    %v2492 = vpack.c.b16 %v2447, %v2444
    %v2493 = vpack.c.b16 %v2448, %v2445
    %v2494 = vpack.c.b16 %v2452, %v2449
    %v2495 = vpack.c.b16 %v2453, %v2450
    %v2496 = vpack.c.b16 %v2454, %v2451
    %v2497 = vpack.c.b16 %v2458, %v2455
    %v2498 = vpack.c.b16 %v2459, %v2456
    %v2499 = vpack.c.b16 %v2460, %v2457
    %v2500 = vpack.c.b16 %v2464, %v2461
    %v2501 = vpack.c.b16 %v2465, %v2462
    %v2502 = vpack.c.b16 %v2466, %v2463
    %v2503 = vpack.c.b16 %v2470, %v2467
    %v2504 = vpack.c.b16 %v2471, %v2468
    %v2505 = vpack.c.b16 %v2472, %v2469
    %v2506 = vpack.c.b16 %v2476, %v2473
    %v2507 = vpack.c.b16 %v2477, %v2474
    %v2508 = vpack.c.b16 %v2478, %v2475
    %v2509 = vpack.c.b16 %v2482, %v2479
    %v2510 = vpack.c.b16 %v2483, %v2480
    %v2511 = vpack.c.b16 %v2484, %v2481
    %v2512 = vpack.c.b16 %v2488, %v2485
    %v2513 = vpack.c.b16 %v2489, %v2486
    %v2514 = vpack.c.b16 %v2490, %v2487
    %2539 = vmatprep.subr.bf16.mxu0 %v2513
    %2540 = vmatpush1.bf16.msra.mxu0 %v2512
    %2541 = vmatprep.subr.bf16.mxu0 %v2510
    %2542 = vmatpush1.bf16.msra.mxu0 %v2509
    %2543 = vmatprep.subr.bf16.mxu0 %v2507
    %2544 = vmatpush1.bf16.msra.mxu0 %v2506
    %2545 = vmatprep.subr.bf16.mxu0 %v2504
    %2546 = vmatpush1.bf16.msra.mxu0 %v2503
    %2547 = vmatprep.subr.bf16.mxu0 %v2501
    %2548 = vmatpush1.bf16.msra.mxu0 %v2500
    %2549 = vmatprep.subr.bf16.mxu0 %v2498
    %2550 = vmatpush1.bf16.msra.mxu0 %v2497
    %2551 = vmatprep.subr.bf16.mxu0 %v2495
    %2552 = vmatpush1.bf16.msra.mxu0 %v2494
    %2553 = vmatprep.subr.bf16.mxu0 %v2492
    %2554 = vmatpush1.bf16.msra.mxu0 %v2491
    %2555 = vmatprep.subr.bf16.mxu0 0
    %2556 = vmatpush2.bf16.msra.mxu0 0
    %2557 = vmatprep.subr.bf16.mxu0 0
    %2558 = vmatpush2.bf16.msra.mxu0 0
    %2559 = vmatprep.subr.bf16.mxu0 0
    %2560 = vmatpush2.bf16.msra.mxu0 0
    %2561 = vmatprep.subr.bf16.mxu0 0
    %2562 = vmatpush2.bf16.msra.mxu0 0
    %2563 = vmatprep.subr.bf16.mxu0 0
    %2564 = vmatpush2.bf16.msra.mxu0 0
    %2565 = vmatprep.subr.bf16.mxu0 0
    %2566 = vmatpush2.bf16.msra.mxu0 0
    %2567 = vmatprep.subr.bf16.mxu0 0
    %2568 = vmatpush2.bf16.msra.mxu0 0
    %2569 = vmatprep.subr.bf16.mxu0 0
    %2570 = vmatpush2.bf16.msra.mxu0 0
    %2571 = vmatprep.mubr.bf16.mxu0 0
    %2572 = vmatmul.mubr.bf16.gmra.mxu0 %v2375
    %v2573 = vpop.f32.mrf.mxu0
    %v2574 = vadd.f32 0.0, %v2573
    %v2575 = vpop.f32.mrf.mxu0
    %v2576 = vadd.f32 0.0, %v2575
    %v2577 = vpop.f32.mrf.mxu0
    %v2578 = vadd.f32 0.0, %v2577
    %v2579 = vpop.f32.mrf.mxu0
    %v2580 = vadd.f32 0.0, %v2579
    %2581 = vmatprep.mubr.bf16.mxu0 0
    %2582 = vmatmul.mubr.bf16.gmra.mxu0 %v2376
    %v2583 = vpop.f32.mrf.mxu0
    %v2584 = vadd.f32 0.0, %v2583
    %v2585 = vpop.f32.mrf.mxu0
    %v2586 = vadd.f32 0.0, %v2585
    %v2587 = vpop.f32.mrf.mxu0
    %v2588 = vadd.f32 0.0, %v2587
    %v2589 = vpop.f32.mrf.mxu0
    %v2590 = vadd.f32 0.0, %v2589
    %2591 = vmatprep.mubr.bf16.mxu0 0
    %2592 = vmatmul.mubr.bf16.gmra.mxu0 %v2377
    %v2593 = vpop.f32.mrf.mxu0
    %v2594 = vadd.f32 0.0, %v2593
    %v2595 = vpop.f32.mrf.mxu0
    %v2596 = vadd.f32 0.0, %v2595
    %v2597 = vpop.f32.mrf.mxu0
    %v2598 = vadd.f32 0.0, %v2597
    %v2599 = vpop.f32.mrf.mxu0
    %v2600 = vadd.f32 0.0, %v2599
    %2601 = vmatprep.mubr.bf16.mxu0 0
    %2602 = vmatmul.mubr.bf16.gmra.mxu0 %v2378
    %v2603 = vpop.f32.mrf.mxu0
    %v2604 = vadd.f32 0.0, %v2603
    %v2605 = vpop.f32.mrf.mxu0
    %v2606 = vadd.f32 0.0, %v2605
    %v2607 = vpop.f32.mrf.mxu0
    %v2608 = vadd.f32 0.0, %v2607
    %v2609 = vpop.f32.mrf.mxu0
    %v2610 = vadd.f32 0.0, %v2609
    %2611 = vdwg.mxu0
    %2612 = vmatprep.subr.bf16.mxu0 0
    %2613 = vmatpush1.bf16.msra.mxu0 %v2514
    %2614 = vmatprep.subr.bf16.mxu0 0
    %2615 = vmatpush1.bf16.msra.mxu0 %v2511
    %2616 = vmatprep.subr.bf16.mxu0 0
    %2617 = vmatpush1.bf16.msra.mxu0 %v2508
    %2618 = vmatprep.subr.bf16.mxu0 0
    %2619 = vmatpush1.bf16.msra.mxu0 %v2505
    %2620 = vmatprep.subr.bf16.mxu0 0
    %2621 = vmatpush1.bf16.msra.mxu0 %v2502
    %2622 = vmatprep.subr.bf16.mxu0 0
    %2623 = vmatpush1.bf16.msra.mxu0 %v2499
    %2624 = vmatprep.subr.bf16.mxu0 0
    %2625 = vmatpush1.bf16.msra.mxu0 %v2496
    %2626 = vmatprep.subr.bf16.mxu0 0
    %2627 = vmatpush1.bf16.msra.mxu0 %v2493
    %2628 = vmatprep.subr.bf16.mxu0 0
    %2629 = vmatpush2.bf16.msra.mxu0 0
    %2630 = vmatprep.subr.bf16.mxu0 0
    %2631 = vmatpush2.bf16.msra.mxu0 0
    %2632 = vmatprep.subr.bf16.mxu0 0
    %2633 = vmatpush2.bf16.msra.mxu0 0
    %2634 = vmatprep.subr.bf16.mxu0 0
    %2635 = vmatpush2.bf16.msra.mxu0 0
    %2636 = vmatprep.subr.bf16.mxu0 0
    %2637 = vmatpush2.bf16.msra.mxu0 0
    %2638 = vmatprep.subr.bf16.mxu0 0
    %2639 = vmatpush2.bf16.msra.mxu0 0
    %2640 = vmatprep.subr.bf16.mxu0 0
    %2641 = vmatpush2.bf16.msra.mxu0 0
    %2642 = vmatprep.subr.bf16.mxu0 0
    %2643 = vmatpush2.bf16.msra.mxu0 0
    %2644 = vmatprep.mubr.bf16.mxu0 0
    %2645 = vmatmul.mubr.bf16.gmra.mxu0 %v2375
    %v2646 = vpop.f32.mrf.mxu0
    %v2647 = vadd.f32 0.0, %v2646
    %v2648 = vpop.f32.mrf.mxu0
    %v2649 = vpop.f32.mrf.mxu0
    %v2650 = vadd.f32 0.0, %v2649
    %v2651 = vpop.f32.mrf.mxu0
    %2652 = vmatprep.mubr.bf16.mxu0 0
    %2653 = vmatmul.mubr.bf16.gmra.mxu0 %v2376
    %v2654 = vpop.f32.mrf.mxu0
    %v2655 = vadd.f32 0.0, %v2654
    %v2656 = vpop.f32.mrf.mxu0
    %v2657 = vpop.f32.mrf.mxu0
    %v2658 = vadd.f32 0.0, %v2657
    %v2659 = vpop.f32.mrf.mxu0
    %2660 = vmatprep.mubr.bf16.mxu0 0
    %2661 = vmatmul.mubr.bf16.gmra.mxu0 %v2377
    %v2662 = vpop.f32.mrf.mxu0
    %v2663 = vadd.f32 0.0, %v2662
    %v2664 = vpop.f32.mrf.mxu0
    %v2665 = vpop.f32.mrf.mxu0
    %v2666 = vadd.f32 0.0, %v2665
    %v2667 = vpop.f32.mrf.mxu0
    %2668 = vmatprep.mubr.bf16.mxu0 0
    %2669 = vmatmul.mubr.bf16.gmra.mxu0 %v2378
    %v2670 = vpop.f32.mrf.mxu0
    %v2671 = vadd.f32 0.0, %v2670
    %v2672 = vpop.f32.mrf.mxu0
    %v2673 = vpop.f32.mrf.mxu0
    %v2674 = vadd.f32 0.0, %v2673
    %v2675 = vpop.f32.mrf.mxu0
    %2676 = vdwg.mxu0
    %v2677 = vld [vmem:[#allocation21] sm:$0xff]
    %v2678 = vld [vmem:[#allocation21 + $0x8] sm:$0xff]
    %v2679 = vld [vmem:[#allocation21 + $0x10] sm:$0xff]
    %v2680 = vld [vmem:[#allocation21 + $0x18] sm:$0xff]
    %v2681 = vld [vmem:[#allocation21 + $0x20] sm:$0xff]
    %v2682 = vld [vmem:[#allocation21 + $0x28] sm:$0xff]
    %v2683 = vld [vmem:[#allocation21 + $0x30] sm:$0xff]
    %v2684 = vld [vmem:[#allocation21 + $0x38] sm:$0xff]
    %v2685 = vpack.c.bf16 %v2578, %v2574
    %v2686 = vpack.c.bf16 %v2588, %v2584
    %v2687 = vpack.c.bf16 %v2598, %v2594
    %v2688 = vpack.c.bf16 %v2608, %v2604
    %v2689 = vpack.c.bf16 %v2580, %v2576
    %v2690 = vpack.c.bf16 %v2590, %v2586
    %v2691 = vpack.c.bf16 %v2600, %v2596
    %v2692 = vpack.c.bf16 %v2610, %v2606
    %v2693 = vpack.c.bf16 %v2650, %v2647
    %v2694 = vpack.c.bf16 %v2658, %v2655
    %v2695 = vpack.c.bf16 %v2666, %v2663
    %v2696 = vpack.c.bf16 %v2674, %v2671
    %v2697 = vld [vmem:[%s19] sm:$0x1]
    %v2699 = vlaneseq
    %v2700 = vshrl.u32 %v2699, 7
    %v2701 = vsub.s32 0, %v2700
    %v2702 = vrot.slane %v2697, %v2701
    %v2712 = vunpack.c.l.b16 %v2677
    %v2713 = vunpack.c.h.b16 %v2677
    %v2714 = vunpack.c.l.b16 %v2678
    %v2715 = vunpack.c.h.b16 %v2678
    %v2716 = vunpack.c.l.b16 %v2679
    %v2717 = vunpack.c.h.b16 %v2679
    %v2718 = vunpack.c.l.b16 %v2680
    %v2719 = vunpack.c.h.b16 %v2680
    %v2720 = vunpack.c.l.b16 %v2681
    %v2721 = vunpack.c.h.b16 %v2681
    %v2722 = vunpack.c.l.b16 %v2682
    %v2723 = vunpack.c.h.b16 %v2682
    %v2724 = vunpack.c.l.b16 %v2683
    %v2725 = vunpack.c.h.b16 %v2683
    %v2726 = vunpack.c.l.b16 %v2684
    %v2727 = vunpack.c.h.b16 %v2684
    %v2728 = vpack.c.b16 %v2714, %v2712
    %v2729 = vpack.c.b16 %v2715, %v2713
    %v2730 = vpack.c.b16 %v2718, %v2716
    %v2731 = vpack.c.b16 %v2719, %v2717
    %v2732 = vpack.c.b16 %v2722, %v2720
    %v2733 = vpack.c.b16 %v2723, %v2721
    %v2734 = vpack.c.b16 %v2726, %v2724
    %v2735 = vpack.c.b16 %v2727, %v2725
    %v2741 = vsel %vm1776, %v2729, 0
    %v2744 = vsel %vm1776, %v2731, 0
    %v2747 = vsel %vm1776, %v2733, 0
    %v2750 = vsel %vm1776, %v2735, 0
    %2752 = vmatprep.subr.bf16.mxu0 0
    %2753 = vmatpush1.bf16.msra.mxu0 %v2692
    %2754 = vmatprep.subr.bf16.mxu0 0
    %2755 = vmatpush1.bf16.msra.mxu0 %v2691
    %2756 = vmatprep.subr.bf16.mxu0 0
    %2757 = vmatpush1.bf16.msra.mxu0 %v2690
    %2758 = vmatprep.subr.bf16.mxu0 0
    %2759 = vmatpush1.bf16.msra.mxu0 %v2689
    %2760 = vmatprep.subr.bf16.mxu0 0
    %2761 = vmatpush1.bf16.msra.mxu0 %v2688
    %2762 = vmatprep.subr.bf16.mxu0 0
    %2763 = vmatpush1.bf16.msra.mxu0 %v2687
    %2764 = vmatprep.subr.bf16.mxu0 0
    %2765 = vmatpush1.bf16.msra.mxu0 %v2686
    %2766 = vmatprep.subr.bf16.mxu0 0
    %2767 = vmatpush1.bf16.msra.mxu0 %v2685
    %2768 = vmatprep.subr.bf16.mxu0 0
    %2769 = vmatpush2.bf16.msra.mxu0 0
    %2770 = vmatprep.subr.bf16.mxu0 0
    %2771 = vmatpush2.bf16.msra.mxu0 0
    %2772 = vmatprep.subr.bf16.mxu0 0
    %2773 = vmatpush2.bf16.msra.mxu0 0
    %2774 = vmatprep.subr.bf16.mxu0 0
    %2775 = vmatpush2.bf16.msra.mxu0 0
    %2776 = vmatprep.subr.bf16.mxu0 0
    %2777 = vmatpush2.bf16.msra.mxu0 %v2696
    %2778 = vmatprep.subr.bf16.mxu0 0
    %2779 = vmatpush2.bf16.msra.mxu0 %v2695
    %2780 = vmatprep.subr.bf16.mxu0 0
    %2781 = vmatpush2.bf16.msra.mxu0 %v2694
    %2782 = vmatprep.subr.bf16.mxu0 0
    %2783 = vmatpush2.bf16.msra.mxu0 %v2693
    %2784 = vmatprep.mubr.bf16.mxu0 %v2741
    %2785 = vmatmul.mubr.bf16.gmra.mxu0 %v2728
    %v2786 = vpop.f32.mrf.mxu0
    %v2787 = vadd.f32 %v2702, %v2786
    %v2788 = vpop.f32.mrf.mxu0
    %v2789 = vpop.f32.mrf.mxu0
    %v2790 = vadd.f32 %v2702, %v2789
    %v2791 = vpop.f32.mrf.mxu0
    %2792 = vmatprep.mubr.bf16.mxu0 %v2744
    %2793 = vmatmul.mubr.bf16.gmra.mxu0 %v2730
    %v2794 = vpop.f32.mrf.mxu0
    %v2795 = vadd.f32 %v2702, %v2794
    %v2796 = vpop.f32.mrf.mxu0
    %v2797 = vpop.f32.mrf.mxu0
    %v2798 = vadd.f32 %v2702, %v2797
    %v2799 = vpop.f32.mrf.mxu0
    %2800 = vmatprep.mubr.bf16.mxu0 %v2747
    %2801 = vmatmul.mubr.bf16.gmra.mxu0 %v2732
    %v2802 = vpop.f32.mrf.mxu0
    %v2803 = vadd.f32 %v2702, %v2802
    %v2804 = vpop.f32.mrf.mxu0
    %v2805 = vpop.f32.mrf.mxu0
    %v2806 = vadd.f32 %v2702, %v2805
    %v2807 = vpop.f32.mrf.mxu0
    %2808 = vmatprep.mubr.bf16.mxu0 %v2750
    %2809 = vmatmul.mubr.bf16.gmra.mxu0 %v2734
    %v2810 = vpop.f32.mrf.mxu0
    %v2811 = vadd.f32 %v2702, %v2810
    %v2812 = vpop.f32.mrf.mxu0
    %v2813 = vpop.f32.mrf.mxu0
    %v2814 = vadd.f32 %v2702, %v2813
    %v2815 = vpop.f32.mrf.mxu0
    %2816 = vdwg.mxu0
    %2817 = vst [vmem:[%s20] sm:$0xff] %v2787
    %2818 = vst [vmem:[%s20 + $0x8] sm:$0xff] %v2790
    %2819 = vst [vmem:[%s20 + $0x10] sm:$0xff] %v2795
    %2820 = vst [vmem:[%s20 + $0x18] sm:$0xff] %v2798
    %2821 = vst [vmem:[%s20 + $0x20] sm:$0xff] %v2803
    %2822 = vst [vmem:[%s20 + $0x28] sm:$0xff] %v2806
    %2823 = vst [vmem:[%s20 + $0x30] sm:$0xff] %v2811
    %2824 = vst [vmem:[%s20 + $0x38] sm:$0xff] %v2814
    // Predicated region
    $region138: #{_lambda_.1} parent=1 // pred_check
      _
    $region139: #{_lambda_.1} parent=1 // pred_check_branch
      %2826 = sbr.rel (0) target = $region141
    $region140: #{_lambda_.1} parent=1 // pred_region
      _
    $region141: #{_lambda_.1} parent=1 // pred_fallthru
      _
    // Predicated region
    $region142: #{_lambda_.1} parent=1 // pred_check
      _
    $region143: #{_lambda_.1} parent=1 // pred_check_branch
      %2828 = sbr.rel (0) target = $region145
    $region144: #{_lambda_.1} parent=1 // pred_region
      _
    $region145: #{_lambda_.1} parent=1 // pred_fallthru
      _
    %2829 = vsyncpa [#allocation3], 1
    %2830 = vsyncpa [#allocation5], 1
    %2831 = vsyncpa [#allocation8], 1
    %2832 = vsyncpa [#allocation11], 1
    %2833 = vsyncpa [#allocation14], 1
    %2834 = vsyncpa [#allocation17], 1
    %2835 = vsyncpa [#allocation20], 1
    %2836 = vsyncpa [#allocation23], 1

</llo_original>
